<compile_context>
chip_gen: v7x
topology: tpu7x:2x2x1
jax: 0.10.0
libtpu: 0.0.40
codegen_flags: <defaults>
</compile_context>

<pallas_src>
import functools
import numpy as np
import jax
import jax.numpy as jnp
from jax.experimental import pallas as pl
from jax.experimental.pallas import tpu as pltpu

NUM_CLASSES = 120

# Reduced demo trunk (keeps the module's forward semantics; small so the script
# runs in seconds).  Swap CFG / IMG for the full model.
IMG = 32
CFG = [32, 32, "M", 64, 64, "M", 128, 128, "M"]
FULL_VGG16_CFG = [64, 64, "M", 128, 128, "M", 256, 256, 256, "M",
                  512, 512, 512, "M", 512, 512, 512, "M"]       # use with IMG = 224

_NUM_POOLS = CFG.count("M")
_LAST_C = [v for v in CFG if v != "M"][-1]
FEAT_HW = IMG // (2 ** _NUM_POOLS)
NUM_FEATURES = _LAST_C * FEAT_HW * FEAT_HW
FC_H1, FC_H2 = 4096, 1024
_VMEM_LIMIT = 48 * 1024 * 1024          # < v7x 64 MiB physical, > v5e/v6e defaults


def _round_up(x, m):
    return ((x + m - 1) // m) * m


# --------------------- Pallas matmul + bias + activation ---------------------
def _matmul_kernel(a_ref, b_ref, bias_ref, o_ref, acc_ref, *, activation):
    k = pl.program_id(2)

    @pl.when(k == 0)
    def _():
        acc_ref[...] = jnp.zeros_like(acc_ref)

    acc_ref[...] += jnp.dot(a_ref[...], b_ref[...],
                            preferred_element_type=jnp.float32)

    @pl.when(k == pl.num_programs(2) - 1)
    def _():
        out = acc_ref[...] + bias_ref[...]
        if activation == "relu":
            out = jnp.maximum(out, 0.0)
        elif activation == "tanh":
            out = jnp.tanh(out)
        elif activation == "sigmoid":
            out = jax.nn.sigmoid(out)
        o_ref[...] = out.astype(o_ref.dtype)


def pallas_linear(x, w, b, activation="none", out_dtype=jnp.float32):
    """y = activation(x @ w + b).  x:(M,K), w:(K,N) pre-packed bf16, b:(N,) f32.

    Tiled for the M~batch (GEMV-ish) regime: tm is the padded batch, wide tk*tn
    bf16 weight blocks (up to 2 MiB per DMA) so the kernel is bound on streaming
    the weights, f32 accumulation and a configurable out_dtype so intermediate
    FCs emit bf16 directly."""
    M, K = x.shape
    N = w.shape[1]
    Mp = _round_up(M, 8)
    tm = Mp if Mp <= 256 else 256
    Kp = _round_up(K, 128)
    Np = _round_up(N, 128)
    tk = next(c for c in (1024, 512, 256, 128) if Kp % c == 0)
    tn = next(c for c in (1024, 512, 256, 128) if Np % c == 0)

    xp = jnp.pad(x.astype(jnp.bfloat16), ((0, Mp - M), (0, Kp - K)))
    wp = jnp.pad(w.astype(jnp.bfloat16), ((0, Kp - K), (0, Np - N)))
    bp = jnp.pad(b.astype(jnp.float32), (0, Np - N)).reshape(1, Np)

    out = pl.pallas_call(
        functools.partial(_matmul_kernel, activation=activation),
        out_shape=jax.ShapeDtypeStruct((Mp, Np), out_dtype),
        grid_spec=pltpu.PrefetchScalarGridSpec(
            num_scalar_prefetch=0,
            grid=(Mp // tm, Np // tn, Kp // tk),
            in_specs=[
                pl.BlockSpec((tm, tk), lambda i, j, k: (i, k)),
                pl.BlockSpec((tk, tn), lambda i, j, k: (k, j)),
                pl.BlockSpec((1, tn), lambda i, j, k: (0, j)),
            ],
            out_specs=pl.BlockSpec((tm, tn), lambda i, j, k: (i, j)),
            scratch_shapes=[pltpu.VMEM((tm, tn), jnp.float32)],
        ),
        compiler_params=pltpu.CompilerParams(
            dimension_semantics=("parallel", "parallel", "arbitrary"),
            vmem_limit_bytes=_VMEM_LIMIT),
    )(xp, wp, bp)
    return out[:M, :N]


# ----------- Pallas direct 3x3 conv (row/Cout tiled, no HBM im2col) ----------
def _conv3x3_kernel(cur_ref, nxt_ref, w_ref, b_ref, o_ref, xbuf, *,
                    shifts, m, halo, tr, win, wv, tc, pool):
    # Stage current row-tile slab + halo rows of the next tile into one
    # contiguous VMEM buffer so every tap is a plain shifted 2-D slab.
    xbuf[:m, :] = cur_ref[0]
    xbuf[m:, :] = nxt_ref[0, :halo, :]

    # 9 shifted bf16 matmuls accumulate in f32; im2col never exists in HBM.
    # TODO(synk): for Cin < 256 on v6e/v7x, pack two taps along K to fill the
    # 256-deep MXU (demo layers have Cin 8..128).
    acc = jnp.dot(xbuf[shifts[0]:shifts[0] + m, :], w_ref[0],
                  preferred_element_type=jnp.float32)
    for t in range(1, 9):
        s = shifts[t]
        acc = acc + jnp.dot(xbuf[s:s + m, :], w_ref[t],
                            preferred_element_type=jnp.float32)

    y = jnp.maximum(acc + b_ref[...], 0.0)              # bias + ReLU, (m, tc) f32
    if pool:
        # fused row-pair half of the following 2x2 maxpool
        y = y.reshape(tr // 2, 2 * win, tc)
        y = jnp.maximum(y[:, :win, :], y[:, win:, :])   # (tr//2, win, tc)
    else:
        y = y.reshape(tr, win, tc)
    # drop the halo/junk columns in VMEM (no XLA HBM slice afterwards)
    # TODO(synk): merging (W,TC) into lanes here would give fully lane-dense
    # stores for the small-channel layers at the cost of a sublane->lane relayout.
    o_ref[0, 0] = y[:, :wv, :].astype(o_ref.dtype)


def conv3x3_relu(x, w9, b, *, pool=False):
    """3x3 conv, stride 1, pad 1, fused bias+ReLU (+ fused row-pair max of a
    following 2x2 maxpool when pool=True).

    x: (B,H,W,Cin) bf16 NHWC, w9: (9,Cin,Cout) bf16, b: (1,Cout) f32.

    grid = (B, cout_tiles, row_tiles) with the row axis innermost so the weight
    block stays VMEM-resident across row tiles.  The padded activation is
    flattened to (B,(H+TR)*Win,Cin) with Win 8-aligned so each tap (dh,dw) is a
    contiguous row-slab at offset dh*Win+dw; the halo for a row tile comes from
    a second (shifted by one tile) view of the same array."""
    B, H, W, Cin = x.shape
    Cout = w9.shape[-1]
    if Cin < 8:                       # first layer: pad channels 3 -> 8 only
        pad_c = 8 - Cin
        x = jnp.pad(x, ((0, 0), (0, 0), (0, 0), (0, pad_c)))
        w9 = jnp.pad(w9, ((0, 0), (0, pad_c), (0, 0)))
        Cin = 8

    TR = 16 if H % 16 == 0 else H          # output-row tile
    assert H % TR == 0 and TR >= 4 and (not pool or TR % 2 == 0)
    n_rt = H // TR
    Win = _round_up(W + 2, 8)              # 1 left pad + >=1 right pad, 8-aligned
    TC = Cout if Cout <= 256 else 256      # Cout tile
    n_ct = Cout // TC
    m = TR * Win
    halo = 4 * Win                         # >= 2*Win+2, bf16 sublane aligned

    # fat flat layout: 1 top pad row, TR-1 bottom pad rows -> (n_rt+1) row-tile
    # blocks, so the "next tile" halo view exists for the last row tile.
    # TODO(synk): have the previous layer write straight into this layout to
    # also remove the XLA pad copy per layer.
    xf = jnp.pad(x, ((0, 0), (1, TR - 1), (1, Win - W - 1), (0, 0)))
    xf = xf.reshape(B, (H + TR) * Win, Cin)
    shifts = tuple(dh * Win + dw for dh in range(3) for dw in range(3))

    TRo = TR // 2 if pool else TR
    H_out = H // 2 if pool else H

    out = pl.pallas_call(
        functools.partial(_conv3x3_kernel, shifts=shifts, m=m, halo=halo,
                          tr=TR, win=Win, wv=W, tc=TC, pool=pool),
        out_shape=jax.ShapeDtypeStruct((B, n_ct, H_out, W, TC), jnp.bfloat16),
        grid=(B, n_ct, n_rt),
        in_specs=[
            pl.BlockSpec((1, m, Cin), lambda bi, co, rt: (bi, rt, 0)),      # row tile
            pl.BlockSpec((1, m, Cin), lambda bi, co, rt: (bi, rt + 1, 0)),  # halo view
            pl.BlockSpec((9, Cin, TC), lambda bi, co, rt: (0, 0, co)),      # resident
            pl.BlockSpec((1, TC), lambda bi, co, rt: (0, co)),
        ],
        out_specs=pl.BlockSpec((1, 1, TRo, W, TC),
                               lambda bi, co, rt: (bi, co, rt, 0, 0)),
        scratch_shapes=[pltpu.VMEM((m + halo, Cin), jnp.bfloat16)],
        compiler_params=pltpu.CompilerParams(
            dimension_semantics=("parallel", "parallel", "arbitrary"),
            vmem_limit_bytes=_VMEM_LIMIT),
    )(xf, xf, w9, b)

    if n_ct == 1:                        # demo config: free reshape, no copy
        return out.reshape(B, H_out, W, Cout)
    # full-VGG Cout=512 only: one transpose to restore NHWC
    return jnp.transpose(out.reshape(B, n_ct, H_out, W, TC),
                         (0, 2, 3, 1, 4)).reshape(B, H_out, W, Cout)


# -------- column-pair max completing the 2x2 pool (row half fused above) ------
def _colpool_kernel(x_ref, o_ref, *, c):
    a = x_ref[...]                                    # (1, R, 2C): col pairs in lanes
    o_ref[...] = jnp.maximum(a[..., :c], a[..., c:])


def maxpool_cols(h):
    """h: (B, H2, W, C) (already row-pooled) -> (B, H2, W//2, C)."""
    B, H2, W, C = h.shape
    W2 = W // 2
    R = H2 * W2
    rt = R if R <= 4096 else next(
        (d for d in (4096, 2048, 1024, 512, 256, 128, 64, 32, 16, 8) if R % d == 0), R)
    xr = h.reshape(B, R, 2 * C)                       # free reshape (channel-minor)
    out = pl.pallas_call(
        functools.partial(_colpool_kernel, c=C),
        out_shape=jax.ShapeDtypeStruct((B, R, C), h.dtype),
        grid=(B, R // rt),
        in_specs=[pl.BlockSpec((1, rt, 2 * C), lambda bi, r: (bi, r, 0))],
        out_specs=pl.BlockSpec((1, rt, C), lambda bi, r: (bi, r, 0)),
        compiler_params=pltpu.CompilerParams(
            dimension_semantics=("parallel", "parallel"),
            vmem_limit_bytes=_VMEM_LIMIT),
    )(xr)
    return out.reshape(B, H2, W2, C)


# -------------------------------- VGG trunk ----------------------------------
def vgg_features(params, x):
    """Shared `features` trunk (conv1 and conv2 wrap the SAME layer objects)."""
    h = x.astype(jnp.bfloat16)    # bf16 inter-layer activations (intentional
                                  # precision tradeoff vs the f32 PyTorch ref)
    ci, i = 0, 0
    while i < len(CFG):
        v = CFG[i]
        if v == "M":
            # TODO(synk): unreachable for VGG-style cfgs (a pool always follows
            # a conv and is fused above); plain-JAX fallback kept for generality.
            h = jnp.max(h.reshape(h.shape[0], h.shape[1] // 2, 2,
                                  h.shape[2] // 2, 2, h.shape[3]), axis=(2, 4))
            i += 1
            continue
        pool = i + 1 < len(CFG) and CFG[i + 1] == "M"
        h = conv3x3_relu(h, params[f"conv{ci}_w"], params[f"conv{ci}_b"], pool=pool)
        if pool:
            h = maxpool_cols(h)
        ci += 1
        i += 2 if pool else 1
    return h


# --------- dynamic crop + bilinear resize as interpolation matmuls -----------
def _interp_matrix(i0_img, i_end):
    """(IMG, IMG) bilinear interpolation matrix resizing the source window
    [i0_img, i_end) to IMG samples (align_corners=False, == F.upsample), built
    from one-hots so the resize runs as MXU matmuls instead of gathers."""
    S = IMG
    n = (i_end - i0_img).astype(jnp.float32)
    d = jnp.arange(S, dtype=jnp.float32) + 0.5
    src = jnp.maximum(n / S * d - 0.5, 0.0)
    p0 = jnp.floor(src).astype(jnp.int32)
    p1 = p0 + (p0 < (i_end - i0_img) - 1).astype(jnp.int32)
    lam = (src - p0.astype(jnp.float32))[:, None]
    cols = jnp.arange(S, dtype=jnp.int32)[None, :]
    oh0 = (cols == (i0_img + p0)[:, None]).astype(jnp.float32)
    oh1 = (cols == (i0_img + p1)[:, None]).astype(jnp.float32)
    return (1.0 - lam) * oh0 + lam * oh1


def crop_resize(x, r0, c0, r_end, c_end):
    """x: (B, IMG, IMG, C) f32 NHWC; per-image crop resized back to IMG x IMG.
    TODO(synk): could become a Pallas kernel with the box coords as scalar
    prefetch; the matmul form already runs on the MXU and pipelines."""
    Wr = jax.vmap(_interp_matrix)(r0, r_end)          # (B, IMG, IMG)
    Wc = jax.vmap(_interp_matrix)(c0, c_end)          # (B, IMG, IMG)
    t = jnp.einsum("bds,bswc->bdwc", Wr, x)           # interpolate rows
    return jnp.einsum("bet,bdtc->bdec", Wc, t)        # interpolate cols


# ---------------------------------- forward ----------------------------------
@functools.partial(jax.jit, static_argnums=(2,))
def forward(params, x_nchw, batch_size):
    x = jnp.transpose(x_nchw, (0, 2, 3, 1))              # NCHW -> NHWC (3ch input)

    # branch 1 (conv1 trunk)
    feat1 = vgg_features(params, x)                      # (B, FH, FW, C) NHWC
    # FC weight rows were permuted (c,h,w)->(h,w,c) at init, so flatten directly
    # (no NHWC->NCHW transpose / HBM relayout).
    out1 = feat1.reshape(batch_size, NUM_FEATURES).astype(jnp.bfloat16)

    # fc1_1_1 (relu head) and fc1_2_1 (tanh head) share the input -> one matmul
    heads = pallas_linear(out1, params["fc1_heads_w"], params["fc1_heads_b"], "none")
    out1_1 = jnp.maximum(heads[:, :FC_H1], 0.0).astype(jnp.bfloat16)
    out1_2 = jnp.tanh(heads[:, FC_H1:]).astype(jnp.bfloat16)
    label1 = pallas_linear(out1_1, params["fc1_1_2_w"], params["fc1_1_2_b"], "none")
    bbox = pallas_linear(out1_2, params["fc1_2_2_w"], params["fc1_2_2_b"],
                         "sigmoid") * float(IMG)

    # bbox -> integer box (mirrors the int()/branching logic of the module)
    r0 = jnp.clip(jnp.floor(bbox[:, 0]).astype(jnp.int32), 0, IMG - 1)
    c0 = jnp.clip(jnp.floor(bbox[:, 1]).astype(jnp.int32), 0, IMG - 1)
    r1 = jnp.floor(bbox[:, 2]).astype(jnp.int32)
    c1 = jnp.floor(bbox[:, 3]).astype(jnp.int32)
    r_end = jnp.where(r1 > r0, r1, IMG)
    c_end = jnp.where(c1 > c0, c1, IMG)
    boxes = jnp.stack([r0, c0, r_end, c_end], axis=1)

    # crop + bilinear resize back to IMG x IMG
    y = crop_resize(x, r0, c0, r_end, c_end)

    # branch 2 (conv2 trunk: same shared weights)
    feat2 = vgg_features(params, y)
    out2 = feat2.reshape(batch_size, NUM_FEATURES).astype(jnp.bfloat16)
    out2 = pallas_linear(out2, params["fc2_1_w"], params["fc2_1_b"], "relu",
                         out_dtype=jnp.bfloat16)
    label2 = pallas_linear(out2, params["fc2_2_w"], params["fc2_2_b"], "none")
    return boxes, label1, label2


# ----------------------------- parameter creation ----------------------------
def init_params(key):
    """Weights pre-packed for the kernels: conv (9,Cin,Cout) bf16 / bias (1,Cout)
    f32, FC (K,N) bf16 / bias (N,) f32.  FC weights consuming the flattened
    feature map have their K rows permuted from torch's (c,h,w) order to
    (h,w,c) so the NHWC feature map flattens without a transpose.
    TODO(synk): torchvision's pretrained VGG16 weights cannot be loaded here;
    parameters are deterministic random with matching shapes."""
    params = {}
    keys = iter(jax.random.split(key, 64))
    cin, ci = 3, 0
    for v in CFG:
        if v == "M":
            continue
        w = (jax.random.normal(next(keys), (9, cin, v), jnp.float32)
             * np.sqrt(2.0 / (cin * 9)))
        params[f"conv{ci}_w"] = w.astype(jnp.bfloat16)
        params[f"conv{ci}_b"] = jax.random.normal(next(keys), (1, v), jnp.float32) * 0.01
        cin, ci = v, ci + 1

    def linear(k, in_f, out_f):
        kw, kb = jax.random.split(k)
        w = jax.random.normal(kw, (in_f, out_f), jnp.float32) * np.sqrt(1.0 / in_f)
        b = jax.random.normal(kb, (out_f,), jnp.float32) * 0.01
        return w.astype(jnp.bfloat16), b

    def linear_from_features(k, out_f):
        kw, kb = jax.random.split(k)
        w = (jax.random.normal(kw, (_LAST_C, FEAT_HW, FEAT_HW, out_f), jnp.float32)
             * np.sqrt(1.0 / NUM_FEATURES))
        w = jnp.transpose(w, (1, 2, 0, 3)).reshape(NUM_FEATURES, out_f)  # (c,h,w)->(h,w,c)
        b = jax.random.normal(kb, (out_f,), jnp.float32) * 0.01
        return w.astype(jnp.bfloat16), b

    w111, b111 = linear_from_features(next(keys), FC_H1)      # fc1_1_1
    w121, b121 = linear_from_features(next(keys), FC_H2)      # fc1_2_1
    # the two heads share their input -> pre-fuse into one (K, 4096+1024) matmul
    params["fc1_heads_w"] = jnp.concatenate([w111, w121], axis=1)
    params["fc1_heads_b"] = jnp.concatenate([b111, b121], axis=0)
    params["fc1_1_2_w"], params["fc1_1_2_b"] = linear(next(keys), FC_H1, NUM_CLASSES)
    params["fc1_2_2_w"], params["fc1_2_2_b"] = linear(next(keys), FC_H2, 4)
    params["fc2_1_w"], params["fc2_1_b"] = linear_from_features(next(keys), FC_H2)
    params["fc2_2_w"], params["fc2_2_b"] = linear(next(keys), FC_H2, NUM_CLASSES)
    return params


# --------------------------- tiny correctness checks --------------------------
def _self_check():
    k = jax.random.split(jax.random.PRNGKey(123), 8)

    # (a) conv kernel, single row tile, no pooling
    xs = jax.random.uniform(k[0], (2, 8, 8, 3), jnp.float32)
    ws = jax.random.normal(k[1], (9, 3, 16), jnp.float32) * 0.2
    bs = jax.random.normal(k[2], (1, 16), jnp.float32) * 0.1
    got = conv3x3_relu(xs.astype(jnp.bfloat16), ws.astype(jnp.bfloat16), bs)
    got = got.astype(jnp.float32)
    xr = xs.astype(jnp.bfloat16).astype(jnp.float32)
    wr = ws.astype(jnp.bfloat16).astype(jnp.float32).reshape(3, 3, 3, 16)
    ref = jax.lax.conv_general_dilated(xr, wr, (1, 1), "SAME",
                                       dimension_numbers=("NHWC", "HWIO", "NHWC"))
    ref = jnp.maximum(ref + bs.reshape(1, 1, 1, 16), 0.0)
    assert float(jnp.max(jnp.abs(got - ref))) < 1.5e-1, "conv3x3 self-check failed"

    # (b) conv with 2 row tiles (halo path) + fused row pool + column pool kernel
    xs = jax.random.uniform(k[3], (1, 32, 8, 16), jnp.float32)
    ws = jax.random.normal(k[4], (9, 16, 32), jnp.float32) * 0.1
    bs = jax.random.normal(k[5], (1, 32), jnp.float32) * 0.1
    got = maxpool_cols(conv3x3_relu(xs.astype(jnp.bfloat16),
                                    ws.astype(jnp.bfloat16), bs, pool=True))
    got = got.astype(jnp.float32)
    xr = xs.astype(jnp.bfloat16).astype(jnp.float32)
    wr = ws.astype(jnp.bfloat16).astype(jnp.float32).reshape(3, 3, 16, 32)
    ref = jax.lax.conv_general_dilated(xr, wr, (1, 1), "SAME",
                                       dimension_numbers=("NHWC", "HWIO", "NHWC"))
    ref = jnp.maximum(ref + bs.reshape(1, 1, 1, 32), 0.0)
    ref = jnp.max(ref.reshape(1, 16, 2, 4, 2, 32), axis=(2, 4))
    assert float(jnp.max(jnp.abs(got - ref))) < 1.5e-1, "conv+pool self-check failed"

    # (c) linear kernel
    xl = jax.random.normal(k[6], (2, 40), jnp.float32)
    wl = jax.random.normal(k[7], (40, 20), jnp.float32) * 0.1
    bl = jnp.linspace(-0.1, 0.1, 20, dtype=jnp.float32)
    gotl = pallas_linear(xl, wl, bl, "relu")
    refl = jnp.maximum(xl.astype(jnp.bfloat16).astype(jnp.float32)
                       @ wl.astype(jnp.bfloat16).astype(jnp.float32) + bl, 0.0)
    assert float(jnp.max(jnp.abs(gotl - refl))) < 5e-2, "linear self-check failed"


if __name__ == "__main__":
    _self_check()

    B = 2
    kx, kp = jax.random.split(jax.random.PRNGKey(0))
    x = jax.random.uniform(kx, (B, 3, IMG, IMG), jnp.float32)
    params = init_params(kp)

    boxes, label1, label2 = forward(params, x, B)
    jax.block_until_ready((boxes, label1, label2))

    boxes_np = np.asarray(jax.device_get(boxes))       # like the torch model's np boxes
    assert boxes_np.shape == (B, 4)
    assert label1.shape == (B, NUM_CLASSES)
    assert label2.shape == (B, NUM_CLASSES)
    assert bool(jnp.all(jnp.isfinite(label1))) and bool(jnp.all(jnp.isfinite(label2)))
    print("KERNEL_OK")
</pallas_src>

<mosaic_0001>
module attributes {stable_mosaic.version = 11 : i64} {
  func.func @_conv3x3_kernel(%arg0: i32, %arg1: i32, %arg2: i32, %arg3: memref<1x128x8xbf16, #tpu.memory_space<vmem>>, %arg4: memref<1x128x8xbf16, #tpu.memory_space<vmem>>, %arg5: memref<9x8x16xbf16, #tpu.memory_space<vmem>>, %arg6: memref<1x16xf32, #tpu.memory_space<vmem>>, %arg7: memref<1x1x8x8x16xbf16, #tpu.memory_space<vmem>>, %arg8: memref<192x8xbf16, #tpu.memory_space<vmem>>) attributes {dimension_semantics = [#tpu.dimension_semantics<parallel>, #tpu.dimension_semantics<parallel>, #tpu.dimension_semantics<arbitrary>], iteration_bounds = array<i64: 2, 1, 1>, scalar_prefetch = 0 : i64, scratch_operands = 1 : i64, tpu.core_type = #tpu.core_type<tc>, window_params = [{transform_indices = @transform_0, window_bounds = array<i64: 1, 128, 8>}, {transform_indices = @transform_1, window_bounds = array<i64: 1, 128, 8>}, {transform_indices = @transform_2, window_bounds = array<i64: 9, 8, 16>}, {transform_indices = @transform_3, window_bounds = array<i64: 1, 16>}, {transform_indices = @transform_4, window_bounds = array<i64: 1, 1, 8, 8, 16>}]} {
    %c0 = arith.constant 0 : index
    %c0_0 = arith.constant 0 : index
    %c0_1 = arith.constant 0 : index
    %0 = vector.load %arg3[%c0, %c0_0, %c0_1] : memref<1x128x8xbf16, #tpu.memory_space<vmem>>, vector<1x128x8xbf16>
    %1 = vector.shape_cast %0 : vector<1x128x8xbf16> to vector<128x8xbf16>
    %c0_2 = arith.constant 0 : index
    %c0_3 = arith.constant 0 : index
    %2 = vector.load %arg8[%c0_2, %c0_3] : memref<192x8xbf16, #tpu.memory_space<vmem>>, vector<128x8xbf16>
    tpu.vector_store %arg8[%c0_2, %c0_3], %1 {strides = array<i32>} : memref<192x8xbf16, #tpu.memory_space<vmem>>, vector<128x8xbf16>,
    %c0_4 = arith.constant 0 : index
    %c0_5 = arith.constant 0 : index
    %c0_6 = arith.constant 0 : index
    %3 = vector.load %arg4[%c0_4, %c0_5, %c0_6] : memref<1x128x8xbf16, #tpu.memory_space<vmem>>, vector<1x64x8xbf16>
    %4 = vector.shape_cast %3 : vector<1x64x8xbf16> to vector<64x8xbf16>
    %c128 = arith.constant 128 : index
    %c0_7 = arith.constant 0 : index
    %5 = vector.load %arg8[%c128, %c0_7] : memref<192x8xbf16, #tpu.memory_space<vmem>>, vector<64x8xbf16>
    tpu.vector_store %arg8[%c128, %c0_7], %4 {strides = array<i32>} : memref<192x8xbf16, #tpu.memory_space<vmem>>, vector<64x8xbf16>,
    %c0_8 = arith.constant 0 : index
    %c0_9 = arith.constant 0 : index
    %6 = vector.load %arg8[%c0_8, %c0_9] : memref<192x8xbf16, #tpu.memory_space<vmem>>, vector<128x8xbf16>
    %c0_10 = arith.constant 0 : index
    %c0_11 = arith.constant 0 : index
    %c0_12 = arith.constant 0 : index
    %7 = vector.load %arg5[%c0_10, %c0_11, %c0_12] : memref<9x8x16xbf16, #tpu.memory_space<vmem>>, vector<1x8x16xbf16>
    %8 = vector.shape_cast %7 : vector<1x8x16xbf16> to vector<8x16xbf16>
    %cst = arith.constant dense<0.000000e+00> : vector<128x16xf32>
    %9 = tpu.matmul %6, %8, %cst {dimension_numbers = #tpu.dot_dimension_numbers<[1], [0], [0], [1], [0, 0, 1, 1], [], []>} : vector<128x8xbf16>, vector<8x16xbf16>, vector<128x16xf32> -> vector<128x16xf32>
    %c1 = arith.constant 1 : index
    %c0_13 = arith.constant 0 : index
    %10 = vector.load %arg8[%c1, %c0_13] : memref<192x8xbf16, #tpu.memory_space<vmem>>, vector<128x8xbf16>
    %c1_14 = arith.constant 1 : index
    %c0_15 = arith.constant 0 : index
    %c0_16 = arith.constant 0 : index
    %11 = vector.load %arg5[%c1_14, %c0_15, %c0_16] : memref<9x8x16xbf16, #tpu.memory_space<vmem>>, vector<1x8x16xbf16>
    %12 = vector.shape_cast %11 : vector<1x8x16xbf16> to vector<8x16xbf16>
    %cst_17 = arith.constant dense<0.000000e+00> : vector<128x16xf32>
    %13 = tpu.matmul %10, %12, %cst_17 {dimension_numbers = #tpu.dot_dimension_numbers<[1], [0], [0], [1], [0, 0, 1, 1], [], []>} : vector<128x8xbf16>, vector<8x16xbf16>, vector<128x16xf32> -> vector<128x16xf32>
    %14 = arith.addf %9, %13 : vector<128x16xf32>
    %c2 = arith.constant 2 : index
    %c0_18 = arith.constant 0 : index
    %15 = vector.load %arg8[%c2, %c0_18] : memref<192x8xbf16, #tpu.memory_space<vmem>>, vector<128x8xbf16>
    %c2_19 = arith.constant 2 : index
    %c0_20 = arith.constant 0 : index
    %c0_21 = arith.constant 0 : index
    %16 = vector.load %arg5[%c2_19, %c0_20, %c0_21] : memref<9x8x16xbf16, #tpu.memory_space<vmem>>, vector<1x8x16xbf16>
    %17 = vector.shape_cast %16 : vector<1x8x16xbf16> to vector<8x16xbf16>
    %cst_22 = arith.constant dense<0.000000e+00> : vector<128x16xf32>
    %18 = tpu.matmul %15, %17, %cst_22 {dimension_numbers = #tpu.dot_dimension_numbers<[1], [0], [0], [1], [0, 0, 1, 1], [], []>} : vector<128x8xbf16>, vector<8x16xbf16>, vector<128x16xf32> -> vector<128x16xf32>
    %19 = arith.addf %14, %18 : vector<128x16xf32>
    %c16 = arith.constant 16 : index
    %c0_23 = arith.constant 0 : index
    %20 = vector.load %arg8[%c16, %c0_23] : memref<192x8xbf16, #tpu.memory_space<vmem>>, vector<128x8xbf16>
    %c3 = arith.constant 3 : index
    %c0_24 = arith.constant 0 : index
    %c0_25 = arith.constant 0 : index
    %21 = vector.load %arg5[%c3, %c0_24, %c0_25] : memref<9x8x16xbf16, #tpu.memory_space<vmem>>, vector<1x8x16xbf16>
    %22 = vector.shape_cast %21 : vector<1x8x16xbf16> to vector<8x16xbf16>
    %cst_26 = arith.constant dense<0.000000e+00> : vector<128x16xf32>
    %23 = tpu.matmul %20, %22, %cst_26 {dimension_numbers = #tpu.dot_dimension_numbers<[1], [0], [0], [1], [0, 0, 1, 1], [], []>} : vector<128x8xbf16>, vector<8x16xbf16>, vector<128x16xf32> -> vector<128x16xf32>
    %24 = arith.addf %19, %23 : vector<128x16xf32>
    %c17 = arith.constant 17 : index
    %c0_27 = arith.constant 0 : index
    %25 = vector.load %arg8[%c17, %c0_27] : memref<192x8xbf16, #tpu.memory_space<vmem>>, vector<128x8xbf16>
    %c4 = arith.constant 4 : index
    %c0_28 = arith.constant 0 : index
    %c0_29 = arith.constant 0 : index
    %26 = vector.load %arg5[%c4, %c0_28, %c0_29] : memref<9x8x16xbf16, #tpu.memory_space<vmem>>, vector<1x8x16xbf16>
    %27 = vector.shape_cast %26 : vector<1x8x16xbf16> to vector<8x16xbf16>
    %cst_30 = arith.constant dense<0.000000e+00> : vector<128x16xf32>
    %28 = tpu.matmul %25, %27, %cst_30 {dimension_numbers = #tpu.dot_dimension_numbers<[1], [0], [0], [1], [0, 0, 1, 1], [], []>} : vector<128x8xbf16>, vector<8x16xbf16>, vector<128x16xf32> -> vector<128x16xf32>
    %29 = arith.addf %24, %28 : vector<128x16xf32>
    %c18 = arith.constant 18 : index
    %c0_31 = arith.constant 0 : index
    %30 = vector.load %arg8[%c18, %c0_31] : memref<192x8xbf16, #tpu.memory_space<vmem>>, vector<128x8xbf16>
    %c5 = arith.constant 5 : index
    %c0_32 = arith.constant 0 : index
    %c0_33 = arith.constant 0 : index
    %31 = vector.load %arg5[%c5, %c0_32, %c0_33] : memref<9x8x16xbf16, #tpu.memory_space<vmem>>, vector<1x8x16xbf16>
    %32 = vector.shape_cast %31 : vector<1x8x16xbf16> to vector<8x16xbf16>
    %cst_34 = arith.constant dense<0.000000e+00> : vector<128x16xf32>
    %33 = tpu.matmul %30, %32, %cst_34 {dimension_numbers = #tpu.dot_dimension_numbers<[1], [0], [0], [1], [0, 0, 1, 1], [], []>} : vector<128x8xbf16>, vector<8x16xbf16>, vector<128x16xf32> -> vector<128x16xf32>
    %34 = arith.addf %29, %33 : vector<128x16xf32>
    %c32 = arith.constant 32 : index
    %c0_35 = arith.constant 0 : index
    %35 = vector.load %arg8[%c32, %c0_35] : memref<192x8xbf16, #tpu.memory_space<vmem>>, vector<128x8xbf16>
    %c6 = arith.constant 6 : index
    %c0_36 = arith.constant 0 : index
    %c0_37 = arith.constant 0 : index
    %36 = vector.load %arg5[%c6, %c0_36, %c0_37] : memref<9x8x16xbf16, #tpu.memory_space<vmem>>, vector<1x8x16xbf16>
    %37 = vector.shape_cast %36 : vector<1x8x16xbf16> to vector<8x16xbf16>
    %cst_38 = arith.constant dense<0.000000e+00> : vector<128x16xf32>
    %38 = tpu.matmul %35, %37, %cst_38 {dimension_numbers = #tpu.dot_dimension_numbers<[1], [0], [0], [1], [0, 0, 1, 1], [], []>} : vector<128x8xbf16>, vector<8x16xbf16>, vector<128x16xf32> -> vector<128x16xf32>
    %39 = arith.addf %34, %38 : vector<128x16xf32>
    %c33 = arith.constant 33 : index
    %c0_39 = arith.constant 0 : index
    %40 = vector.load %arg8[%c33, %c0_39] : memref<192x8xbf16, #tpu.memory_space<vmem>>, vector<128x8xbf16>
    %c7 = arith.constant 7 : index
    %c0_40 = arith.constant 0 : index
    %c0_41 = arith.constant 0 : index
    %41 = vector.load %arg5[%c7, %c0_40, %c0_41] : memref<9x8x16xbf16, #tpu.memory_space<vmem>>, vector<1x8x16xbf16>
    %42 = vector.shape_cast %41 : vector<1x8x16xbf16> to vector<8x16xbf16>
    %cst_42 = arith.constant dense<0.000000e+00> : vector<128x16xf32>
    %43 = tpu.matmul %40, %42, %cst_42 {dimension_numbers = #tpu.dot_dimension_numbers<[1], [0], [0], [1], [0, 0, 1, 1], [], []>} : vector<128x8xbf16>, vector<8x16xbf16>, vector<128x16xf32> -> vector<128x16xf32>
    %44 = arith.addf %39, %43 : vector<128x16xf32>
    %c34 = arith.constant 34 : index
    %c0_43 = arith.constant 0 : index
    %45 = vector.load %arg8[%c34, %c0_43] : memref<192x8xbf16, #tpu.memory_space<vmem>>, vector<128x8xbf16>
    %c8 = arith.constant 8 : index
    %c0_44 = arith.constant 0 : index
    %c0_45 = arith.constant 0 : index
    %46 = vector.load %arg5[%c8, %c0_44, %c0_45] : memref<9x8x16xbf16, #tpu.memory_space<vmem>>, vector<1x8x16xbf16>
    %47 = vector.shape_cast %46 : vector<1x8x16xbf16> to vector<8x16xbf16>
    %cst_46 = arith.constant dense<0.000000e+00> : vector<128x16xf32>
    %48 = tpu.matmul %45, %47, %cst_46 {dimension_numbers = #tpu.dot_dimension_numbers<[1], [0], [0], [1], [0, 0, 1, 1], [], []>} : vector<128x8xbf16>, vector<8x16xbf16>, vector<128x16xf32> -> vector<128x16xf32>
    %49 = arith.addf %44, %48 : vector<128x16xf32>
    %c0_47 = arith.constant 0 : index
    %c0_48 = arith.constant 0 : index
    %50 = vector.load %arg6[%c0_47, %c0_48] : memref<1x16xf32, #tpu.memory_space<vmem>>, vector<1x16xf32>
    %51 = vector.broadcast %50 : vector<1x16xf32> to vector<128x16xf32>
    %52 = arith.addf %49, %51 : vector<128x16xf32>
    %cst_49 = arith.constant 0.000000e+00 : f32
    %53 = vector.broadcast %cst_49 : f32 to vector<128x16xf32>
    %54 = arith.maximumf %52, %53 : vector<128x16xf32>
    %55 = vector.shape_cast %54 : vector<128x16xf32> to vector<8x16x16xf32>
    %56 = vector.extract_strided_slice %55 {offsets = [0, 0, 0], sizes = [8, 8, 16], strides = [1, 1, 1]} : vector<8x16x16xf32> to vector<8x8x16xf32>
    %57 = arith.truncf %56 : vector<8x8x16xf32> to vector<8x8x16xbf16>
    %c0_50 = arith.constant 0 : index
    %c0_51 = arith.constant 0 : index
    %c0_52 = arith.constant 0 : index
    %c0_53 = arith.constant 0 : index
    %c0_54 = arith.constant 0 : index
    %58 = vector.load %arg7[%c0_50, %c0_51, %c0_52, %c0_53, %c0_54] : memref<1x1x8x8x16xbf16, #tpu.memory_space<vmem>>, vector<1x1x8x8x16xbf16>
    %59 = vector.shape_cast %58 : vector<1x1x8x8x16xbf16> to vector<8x8x16xbf16>
    %60 = vector.shape_cast %57 : vector<8x8x16xbf16> to vector<1x1x8x8x16xbf16>
    tpu.vector_store %arg7[%c0_50, %c0_51, %c0_52, %c0_53, %c0_54], %60 {strides = array<i32>} : memref<1x1x8x8x16xbf16, #tpu.memory_space<vmem>>, vector<1x1x8x8x16xbf16>,
    return
  }
  func.func @transform_0(%arg0: i32, %arg1: i32, %arg2: i32) -> (i32, i32, i32) {
    %c0_i32 = arith.constant 0 : i32
    %c0_i32_0 = arith.constant 0 : i32
    return %arg0, %arg2, %c0_i32 : i32, i32, i32
  }
  func.func @transform_1(%arg0: i32, %arg1: i32, %arg2: i32) -> (i32, i32, i32) {
    %c1_i32 = arith.constant 1 : i32
    %0 = arith.addi %arg2, %c1_i32 : i32
    %c0_i32 = arith.constant 0 : i32
    %c0_i32_0 = arith.constant 0 : i32
    return %arg0, %0, %c0_i32 : i32, i32, i32
  }
  func.func @transform_2(%arg0: i32, %arg1: i32, %arg2: i32) -> (i32, i32, i32) {
    %c0_i32 = arith.constant 0 : i32
    %c0_i32_0 = arith.constant 0 : i32
    %c0_i32_1 = arith.constant 0 : i32
    return %c0_i32, %c0_i32_0, %arg1 : i32, i32, i32
  }
  func.func @transform_3(%arg0: i32, %arg1: i32, %arg2: i32) -> (i32, i32) {
    %c0_i32 = arith.constant 0 : i32
    %c0_i32_0 = arith.constant 0 : i32
    return %c0_i32, %arg1 : i32, i32
  }
  func.func @transform_4(%arg0: i32, %arg1: i32, %arg2: i32) -> (i32, i32, i32, i32, i32) {
    %c0_i32 = arith.constant 0 : i32
    %c0_i32_0 = arith.constant 0 : i32
    %c0_i32_1 = arith.constant 0 : i32
    return %arg0, %arg1, %arg2, %c0_i32, %c0_i32_0 : i32, i32, i32, i32, i32
  }
}

</mosaic_0001>

<llo_original>
// kernel: tpu_custom_call.1
$region0: #{tpu_custom_call.1}
  #allocation0 [shape = 'u32[]', space=smem, size = 0x4, offset = 0x4, fixed_abs, tag = 'smem constant byte address 0x4 - core index']
  #allocation1 [shape = 'u32[144,128]{1,0:T(1,128)}', space=vmem, size = 0x12000, scoped, tag = 'internal scratch']
  #allocation2 [shape = 'bf16[192,8]{1,0:T(16,128)(2,1)}', space=vmem, size = 0xc000, scoped, tag = 'scratch operand']
  %s0 = inlined_call_operand.vmem [shape: bf16[2,256,8], index: 0, kind: input, shape index: {}]
  %s1 = inlined_call_operand.vmem [shape: bf16[2,256,8], index: 1, kind: input, shape index: {}]
  %s2 = inlined_call_operand.vmem [shape: bf16[9,8,16], index: 2, kind: input, shape index: {}]
  %s3 = inlined_call_operand.vmem [shape: f32[1,16], index: 3, kind: input, shape index: {}]
  %s4 = inlined_call_operand.hbm [shape: bf16[2,1,8,8,16], index: 4, kind: output, shape index: {}]
  %s5 = sld [smem:[#allocation0]]
  $region49: #{tpu_custom_call.1} parent=0
    _
  %s7 = ssub.s32 1, %s5
  %s8 = scalar_select 0, %s7, %s5
  $region1: #{tpu_custom_call.1} parent=0
    #allocation3 [shape = 'u8[32768]{0}', space=vmem, size = 0x8000, scoped, tag = 'output window, operand 0']
    #allocation4 [shape = 's32[2]{0}', space=sflag, size = 0x8, scoped, tag = 'scoped memory for tpu_custom_call.1']
    %9 = vsyncpa [#allocation4], 0
    %s10 = scalar_lea.sflag [#allocation4], 1
    %11 = vsyncpa %s10, 0
    loop: start=0, step=1, limit=4
    $region2: #{tpu_custom_call.1} parent=1 // loop_pre_header
      _
    $region3: #{tpu_custom_call.1} parent=1 // loop_header
      %s13 = sphi 0, %s17
      %p14 = scmp.ge.s32.totalorder %s13, 4
      %s20 = sphi 0, %s39
      %s21 = sphi 0, %s35
      %s22 = sphi 0, %s31
      %s23 = sphi 0, %s20
      %s24 = sphi 0, %s21
      %s25 = sphi 0, %s22
      %s26 = sphi 0, %s23
      %s27 = sphi 0, %s24
      %s28 = sphi 0, %s25
      %s44 = sphi 0, %s46
      %s47 = sphi 0, %s44
      %s48 = sphi 0, %s47
      %s64 = sphi 0, %s48
      %s74 = sphi 0, %s76
      %s77 = sphi 0, %s74
      %s78 = sphi 0, %s77
      %s94 = sphi 0, %s78
      %s100 = sphi 0, %s102
      %s103 = sphi 0, %s100
      %s104 = sphi 0, %s103
      %s120 = sphi 0, %s104
      %s126 = sphi 0, %s128
      %s129 = sphi 0, %s126
      %s130 = sphi 0, %s129
      %s146 = sphi 0, %s130
      %s156 = sphi 0, %s158
      %s159 = sphi 0, %s156
      %s160 = sphi 0, %s159
      %s176 = sphi 0, %s160
    $region4: #{tpu_custom_call.1} parent=1 // loop_header_branch
      %16 = sbr.rel (%p14) target = $region8
    $region5: #{tpu_custom_call.1} parent=1 // loop_body
      %s18 = ssub.s32 %s13, 1
      %s19 = ssub.s32 %s13, 2
      %s29 = sadd.s32 1, %s22
      %p30 = scmp.ge.s32.totalorder %s29, 1
      %s31 = scalar_select %p30, 0, %s29
      %s32 = sadd.s32 1, %s21
      %s33 = scalar_select %p30, %s32, %s21
      %p34 = scmp.ge.s32.totalorder %s33, 1
      %s35 = scalar_select %p34, 0, %s33
      %s36 = sadd.s32 1, %s20
      %s37 = scalar_select %p34, %s36, %s20
      %p38 = scmp.ge.s32.totalorder %s37, 2
      %s39 = scalar_select %p38, 0, %s37
      %s40 = ssub.s32 %s20, %s39
      %s41 = ssub.s32 %s22, %s31
      %s42 = sor.u32 %s40, %s41
      %p43 = scmp.eq.s32.totalorder %s42, 0
      %s45 = sadd.s32 %s44, 1
      %s46 = scalar_select %p43, %s44, %s45
      %p49 = pneg %p43
      %p50 = scmp.eq.s32.totalorder %s13, 1
      %p51 = por %p49, %p50
      %p52 = scmp.ne.s32.totalorder %s44, %s47
      %p53 = scmp.eq.s32.totalorder %s13, 0
      %p54 = por %p52, %p53
      %p55 = scmp.ne.s32.totalorder %s44, %s47
      %p56 = scmp.eq.s32.totalorder %s18, 1
      %p57 = por %p55, %p56
      %p58 = scmp.ne.s32.totalorder %s47, %s48
      %p59 = scmp.eq.s32.totalorder %s18, 0
      %p60 = por %p58, %p59
      %p61 = scmp.ne.s32.totalorder %s47, %s48
      %p62 = scmp.eq.s32.totalorder %s19, 1
      %p63 = por %p61, %p62
      %p65 = scmp.ne.s32.totalorder %s48, %s64
      %p66 = scmp.eq.s32.totalorder %s19, 0
      %p67 = por %p65, %p66
      %s68 = sadd.s32 %s22, 1
      %s69 = sadd.s32 %s31, 1
      %s70 = ssub.s32 %s20, %s39
      %s71 = ssub.s32 %s68, %s69
      %s72 = sor.u32 %s70, %s71
      %p73 = scmp.eq.s32.totalorder %s72, 0
      %s75 = sadd.s32 %s74, 1
      %s76 = scalar_select %p73, %s74, %s75
      %p79 = pneg %p73
      %p80 = scmp.eq.s32.totalorder %s13, 1
      %p81 = por %p79, %p80
      %p82 = scmp.ne.s32.totalorder %s74, %s77
      %p83 = scmp.eq.s32.totalorder %s13, 0
      %p84 = por %p82, %p83
      %p85 = scmp.ne.s32.totalorder %s74, %s77
      %p86 = scmp.eq.s32.totalorder %s18, 1
      %p87 = por %p85, %p86
      %p88 = scmp.ne.s32.totalorder %s77, %s78
      %p89 = scmp.eq.s32.totalorder %s18, 0
      %p90 = por %p88, %p89
      %p91 = scmp.ne.s32.totalorder %s77, %s78
      %p92 = scmp.eq.s32.totalorder %s19, 1
      %p93 = por %p91, %p92
      %p95 = scmp.ne.s32.totalorder %s78, %s94
      %p96 = scmp.eq.s32.totalorder %s19, 0
      %p97 = por %p95, %p96
      %s98 = ssub.s32 %s21, %s35
      %p99 = scmp.eq.s32.totalorder %s98, 0
      %s101 = sadd.s32 %s100, 1
      %s102 = scalar_select %p99, %s100, %s101
      %p105 = pneg %p99
      %p106 = scmp.eq.s32.totalorder %s13, 1
      %p107 = por %p105, %p106
      %p108 = scmp.ne.s32.totalorder %s100, %s103
      %p109 = scmp.eq.s32.totalorder %s13, 0
      %p110 = por %p108, %p109
      %p111 = scmp.ne.s32.totalorder %s100, %s103
      %p112 = scmp.eq.s32.totalorder %s18, 1
      %p113 = por %p111, %p112
      %p114 = scmp.ne.s32.totalorder %s103, %s104
      %p115 = scmp.eq.s32.totalorder %s18, 0
      %p116 = por %p114, %p115
      %p117 = scmp.ne.s32.totalorder %s103, %s104
      %p118 = scmp.eq.s32.totalorder %s19, 1
      %p119 = por %p117, %p118
      %p121 = scmp.ne.s32.totalorder %s104, %s120
      %p122 = scmp.eq.s32.totalorder %s19, 0
      %p123 = por %p121, %p122
      %s124 = ssub.s32 %s21, %s35
      %p125 = scmp.eq.s32.totalorder %s124, 0
      %s127 = sadd.s32 %s126, 1
      %s128 = scalar_select %p125, %s126, %s127
      %p131 = pneg %p125
      %p132 = scmp.eq.s32.totalorder %s13, 1
      %p133 = por %p131, %p132
      %p134 = scmp.ne.s32.totalorder %s126, %s129
      %p135 = scmp.eq.s32.totalorder %s13, 0
      %p136 = por %p134, %p135
      %p137 = scmp.ne.s32.totalorder %s126, %s129
      %p138 = scmp.eq.s32.totalorder %s18, 1
      %p139 = por %p137, %p138
      %p140 = scmp.ne.s32.totalorder %s129, %s130
      %p141 = scmp.eq.s32.totalorder %s18, 0
      %p142 = por %p140, %p141
      %p143 = scmp.ne.s32.totalorder %s129, %s130
      %p144 = scmp.eq.s32.totalorder %s19, 1
      %p145 = por %p143, %p144
      %p147 = scmp.ne.s32.totalorder %s130, %s146
      %p148 = scmp.eq.s32.totalorder %s19, 0
      %p149 = por %p147, %p148
      %s150 = ssub.s32 %s20, %s39
      %s151 = ssub.s32 %s21, %s35
      %s152 = sor.u32 %s150, %s151
      %s153 = ssub.s32 %s22, %s31
      %s154 = sor.u32 %s152, %s153
      %p155 = scmp.eq.s32.totalorder %s154, 0
      %s157 = sadd.s32 %s156, 1
      %s158 = scalar_select %p155, %s156, %s157
      %p161 = pneg %p155
      %p162 = scmp.eq.s32.totalorder %s13, 1
      %p163 = por %p161, %p162
      %p164 = scmp.ne.s32.totalorder %s156, %s159
      %p165 = scmp.eq.s32.totalorder %s13, 0
      %p166 = por %p164, %p165
      %p167 = scmp.ne.s32.totalorder %s156, %s159
      %p168 = scmp.eq.s32.totalorder %s18, 1
      %p169 = por %p167, %p168
      %p170 = scmp.ne.s32.totalorder %s159, %s160
      %p171 = scmp.eq.s32.totalorder %s18, 0
      %p172 = por %p170, %p171
      %p173 = scmp.ne.s32.totalorder %s159, %s160
      %p174 = scmp.eq.s32.totalorder %s19, 1
      %p175 = por %p173, %p174
      %p177 = scmp.ne.s32.totalorder %s160, %s176
      %p178 = scmp.eq.s32.totalorder %s19, 0
      %p179 = por %p177, %p178
      %p180 = scmp.le.s32.totalorder 1, %s13
      %p181 = scmp.lt.s32.totalorder %s13, 3
      %p182 = pnand %p180, %p181
      %p183 = pneg %p182
      // Predicated region
      $region9: #{tpu_custom_call.1} parent=5 // pred_check
        _
      $region10: #{tpu_custom_call.1} parent=5 // pred_check_branch
        %185 = sbr.rel (%p182) target = $region12
      $region11: #{tpu_custom_call.1} parent=5 // pred_region
        %s186 = ssub.s32 %s13, 1
        // Predicated region
        $region13: #{tpu_custom_call.1} parent=11 // pred_check
          %p187 = pneg %p116
        $region14: #{tpu_custom_call.1} parent=11 // pred_check_branch
          %189 = sbr.rel (%p187) target = $region16
        $region15: #{tpu_custom_call.1} parent=11 // pred_region
          %p190 = scmp.lt.s32.totalorder %s24, 0
          %s191 = scalar_select %p190, %s24, 0
          %s192 = smul.addr %s191, 4
          %s193 = scalar_lea.vmem %s2, %s192
        $region16: #{tpu_custom_call.1} parent=11 // pred_fallthru
          _
        // Predicated region
        $region17: #{tpu_custom_call.1} parent=11 // pred_check
          %p194 = pneg %p142
        $region18: #{tpu_custom_call.1} parent=11 // pred_check_branch
          %196 = sbr.rel (%p194) target = $region20
        $region19: #{tpu_custom_call.1} parent=11 // pred_region
          %p197 = scmp.lt.s32.totalorder %s24, 0
          %s198 = scalar_select %p197, %s24, 0
          %s199 = scalar_lea.vmem %s3, %s198
        $region20: #{tpu_custom_call.1} parent=11 // pred_fallthru
          _
      $region12: #{tpu_custom_call.1} parent=5 // pred_fallthru
        _
      %p200 = scmp.lt.s32.totalorder %s13, 2
      // Predicated region
      $region21: #{tpu_custom_call.1} parent=5 // pred_check
        %p201 = pneg %p200
      $region22: #{tpu_custom_call.1} parent=5 // pred_check_branch
        %203 = sbr.rel (%p201) target = $region24
      $region23: #{tpu_custom_call.1} parent=5 // pred_region
        // Predicated region
        $region25: #{tpu_custom_call.1} parent=23 // pred_check
          %p204 = pneg %p54
        $region26: #{tpu_custom_call.1} parent=23 // pred_check_branch
          %206 = sbr.rel (%p204) target = $region28
        $region27: #{tpu_custom_call.1} parent=23 // pred_region
          %s207 = smul.u32 16, %s22
          %p208 = scmp.lt.s32.totalorder %s20, 1
          %s209 = scalar_select %p208, %s20, 1
          %p210 = scmp.lt.s32.totalorder %s207, 31
          %s211 = scalar_select %p210, %s207, 31
          %s212 = smul.addr %s209, 32
          %s213 = sadd.s32 %s211, %s212
          %s214 = smul.addr %s213, 4
          %s215 = scalar_lea.vmem %s0, %s214
          %s216 = smul.u32 16, %s22
        $region28: #{tpu_custom_call.1} parent=23 // pred_fallthru
          _
        // Predicated region
        $region29: #{tpu_custom_call.1} parent=23 // pred_check
          %p217 = pneg %p84
        $region30: #{tpu_custom_call.1} parent=23 // pred_check_branch
          %219 = sbr.rel (%p217) target = $region32
        $region31: #{tpu_custom_call.1} parent=23 // pred_region
          %s220 = sadd.s32 %s22, 1
          %s221 = smul.u32 16, %s220
          %p222 = scmp.lt.s32.totalorder %s20, 1
          %s223 = scalar_select %p222, %s20, 1
          %p224 = scmp.lt.s32.totalorder %s221, 31
          %s225 = scalar_select %p224, %s221, 31
          %s226 = smul.addr %s223, 32
          %s227 = sadd.s32 %s225, %s226
          %s228 = smul.addr %s227, 4
          %s229 = scalar_lea.vmem %s1, %s228
          %s230 = sadd.s32 %s22, 1
          %s231 = smul.u32 16, %s230
        $region32: #{tpu_custom_call.1} parent=23 // pred_fallthru
          _
      $region24: #{tpu_custom_call.1} parent=5 // pred_fallthru
        _
      %p232 = scmp.le.s32.totalorder 1, %s13
      %p233 = scmp.lt.s32.totalorder %s13, 3
      %p234 = pnand %p232, %p233
      %p235 = pneg %p234
      // Predicated region
      $region33: #{tpu_custom_call.1} parent=5 // pred_check
        _
      $region34: #{tpu_custom_call.1} parent=5 // pred_check_branch
        %237 = sbr.rel (%p234) target = $region36
      $region35: #{tpu_custom_call.1} parent=5 // pred_region
        %s238 = ssub.s32 %s13, 1
        %s239 = smul.u32 16, %s25
        %p240 = scmp.lt.s32.totalorder %s23, 1
        %s241 = scalar_select %p240, %s23, 1
        %p242 = scmp.lt.s32.totalorder %s239, 31
        %s243 = scalar_select %p242, %s239, 31
        %s244 = smul.addr %s241, 32
        %s245 = sadd.s32 %s243, %s244
        %s246 = smul.addr %s245, 4
        %s247 = scalar_lea.vmem %s0, %s246
        %p248 = pneg %p60
        %p249 = pneg %p57
        %s250 = sadd.s32 %s25, 1
        %s251 = smul.u32 16, %s250
        %p252 = scmp.lt.s32.totalorder %s23, 1
        %s253 = scalar_select %p252, %s23, 1
        %p254 = scmp.lt.s32.totalorder %s251, 31
        %s255 = scalar_select %p254, %s251, 31
        %s256 = smul.addr %s253, 32
        %s257 = sadd.s32 %s255, %s256
        %s258 = smul.addr %s257, 4
        %s259 = scalar_lea.vmem %s1, %s258
        %p260 = pneg %p90
        %p261 = pneg %p87
        %p262 = scmp.lt.s32.totalorder %s24, 0
        %s263 = scalar_select %p262, %s24, 0
        %s264 = smul.addr %s263, 4
        %s265 = scalar_lea.vmem %s2, %s264
        %p266 = pneg %p116
        %p267 = pneg %p113
        %p268 = scmp.lt.s32.totalorder %s24, 0
        %s269 = scalar_select %p268, %s24, 0
        %s270 = scalar_lea.vmem %s3, %s269
        %p271 = pneg %p142
        %p272 = pneg %p139
        %p273 = pneg %p172
        %p274 = pneg %p169
        %s275 = sand.u32 %s159, 1
        %s276 = scalar_lea.sflag [#allocation4], %s275
        %s277 = sand.u32 %s159, 1
        %s278 = smul.addr %s277, 32
        %s279 = scalar_lea.vmem [#allocation3], %s278
        %s280 = smul.u32 16, %s25
        %p281 = scmp.lt.s32.totalorder %s23, 1
        %s282 = scalar_select %p281, %s23, 1
        %p283 = scmp.lt.s32.totalorder %s280, 31
        %s284 = scalar_select %p283, %s280, 31
        %s285 = smul.addr %s282, 32
        %s286 = sadd.s32 %s284, %s285
        %s287 = smul.addr %s286, 4
        %s288 = scalar_lea.vmem %s0, %s287
        %s289 = smul.u32 16, %s25
        %s290 = sadd.s32 %s25, 1
        %s291 = smul.u32 16, %s290
        %p292 = scmp.lt.s32.totalorder %s23, 1
        %s293 = scalar_select %p292, %s23, 1
        %p294 = scmp.lt.s32.totalorder %s291, 31
        %s295 = scalar_select %p294, %s291, 31
        %s296 = smul.addr %s293, 32
        %s297 = sadd.s32 %s295, %s296
        %s298 = smul.addr %s297, 4
        %s299 = scalar_lea.vmem %s1, %s298
        %s300 = sadd.s32 %s25, 1
        %s301 = smul.u32 16, %s300
        %p302 = scmp.lt.s32.totalorder %s24, 0
        %s303 = scalar_select %p302, %s24, 0
        %s304 = smul.addr %s303, 4
        %s305 = scalar_lea.vmem %s2, %s304
        %p306 = scmp.lt.s32.totalorder %s24, 0
        %s307 = scalar_select %p306, %s24, 0
        %s308 = scalar_lea.vmem %s3, %s307
        %s309 = smul.u32 8, %s25
        %v311 = vld [vmem:[%s288] sm:$0xf]
        %v312 = vld [vmem:[%s288 + $0x4] sm:$0xf]
        %v313 = vld [vmem:[%s288 + $0x8] sm:$0xf]
        %v314 = vld [vmem:[%s288 + $0xc] sm:$0xf]
        %v315 = vld [vmem:[%s288 + $0x10] sm:$0xf]
        %v316 = vld [vmem:[%s288 + $0x14] sm:$0xf]
        %v317 = vld [vmem:[%s288 + $0x18] sm:$0xf]
        %v318 = vld [vmem:[%s288 + $0x1c] sm:$0xf]
        %v319 = vld [vmem:[%s288 + $0x20] sm:$0xf]
        %v320 = vld [vmem:[%s288 + $0x24] sm:$0xf]
        %v321 = vld [vmem:[%s288 + $0x28] sm:$0xf]
        %v322 = vld [vmem:[%s288 + $0x2c] sm:$0xf]
        %v323 = vld [vmem:[%s288 + $0x30] sm:$0xf]
        %v324 = vld [vmem:[%s288 + $0x34] sm:$0xf]
        %v325 = vld [vmem:[%s288 + $0x38] sm:$0xf]
        %v326 = vld [vmem:[%s288 + $0x3c] sm:$0xf]
        %v343 = vunpack.c.l.b16 %v311
        %v344 = vunpack.c.l.b16 %v312
        %v345 = vunpack.c.l.b16 %v313
        %v346 = vunpack.c.l.b16 %v314
        %v347 = vunpack.c.l.b16 %v315
        %v348 = vunpack.c.l.b16 %v316
        %v349 = vunpack.c.l.b16 %v317
        %v350 = vunpack.c.l.b16 %v318
        %v351 = vunpack.c.l.b16 %v319
        %v352 = vunpack.c.l.b16 %v320
        %v353 = vunpack.c.l.b16 %v321
        %v354 = vunpack.c.l.b16 %v322
        %v355 = vunpack.c.l.b16 %v323
        %v356 = vunpack.c.l.b16 %v324
        %v357 = vunpack.c.l.b16 %v325
        %v358 = vunpack.c.l.b16 %v326
        %v359 = vpack.c.b16 %v344, %v343
        %v360 = vpack.c.b16 %v346, %v345
        %v361 = vpack.c.b16 %v348, %v347
        %v362 = vpack.c.b16 %v350, %v349
        %v363 = vpack.c.b16 %v352, %v351
        %v364 = vpack.c.b16 %v354, %v353
        %v365 = vpack.c.b16 %v356, %v355
        %v366 = vpack.c.b16 %v358, %v357
        %vm375 = vcmask 64512
        %376 = vst.msk [vmem:[#allocation2] sm:$0xff] %vm375, %v359
        %377 = vst.msk [vmem:[#allocation2 + $0x8] sm:$0xff] %vm375, %v360
        %378 = vst.msk [vmem:[#allocation2 + $0x10] sm:$0xff] %vm375, %v361
        %379 = vst.msk [vmem:[#allocation2 + $0x18] sm:$0xff] %vm375, %v362
        %380 = vst.msk [vmem:[#allocation2 + $0x20] sm:$0xff] %vm375, %v363
        %381 = vst.msk [vmem:[#allocation2 + $0x28] sm:$0xff] %vm375, %v364
        %382 = vst.msk [vmem:[#allocation2 + $0x30] sm:$0xff] %vm375, %v365
        %383 = vst.msk [vmem:[#allocation2 + $0x38] sm:$0xff] %vm375, %v366
        %v384 = vld [vmem:[%s299] sm:$0xf]
        %v385 = vld [vmem:[%s299 + $0x4] sm:$0xf]
        %v386 = vld [vmem:[%s299 + $0x8] sm:$0xf]
        %v387 = vld [vmem:[%s299 + $0xc] sm:$0xf]
        %v388 = vld [vmem:[%s299 + $0x10] sm:$0xf]
        %v389 = vld [vmem:[%s299 + $0x14] sm:$0xf]
        %v390 = vld [vmem:[%s299 + $0x18] sm:$0xf]
        %v391 = vld [vmem:[%s299 + $0x1c] sm:$0xf]
        %v400 = vunpack.c.l.b16 %v384
        %v401 = vunpack.c.l.b16 %v385
        %v402 = vunpack.c.l.b16 %v386
        %v403 = vunpack.c.l.b16 %v387
        %v404 = vunpack.c.l.b16 %v388
        %v405 = vunpack.c.l.b16 %v389
        %v406 = vunpack.c.l.b16 %v390
        %v407 = vunpack.c.l.b16 %v391
        %v408 = vpack.c.b16 %v401, %v400
        %v409 = vpack.c.b16 %v403, %v402
        %v410 = vpack.c.b16 %v405, %v404
        %v411 = vpack.c.b16 %v407, %v406
        %416 = vst.msk [vmem:[#allocation2 + $0x40] sm:$0xff] %vm375, %v408
        %417 = vst.msk [vmem:[#allocation2 + $0x48] sm:$0xff] %vm375, %v409
        %418 = vst.msk [vmem:[#allocation2 + $0x50] sm:$0xff] %vm375, %v410
        %419 = vst.msk [vmem:[#allocation2 + $0x58] sm:$0xff] %vm375, %v411
        %v420 = vld [vmem:[#allocation2] sm:$0xff]
        %v421 = vld [vmem:[#allocation2 + $0x8] sm:$0xff]
        %v422 = vld [vmem:[#allocation2 + $0x10] sm:$0xff]
        %v423 = vld [vmem:[#allocation2 + $0x18] sm:$0xff]
        %v424 = vld [vmem:[#allocation2 + $0x20] sm:$0xff]
        %v425 = vld [vmem:[#allocation2 + $0x28] sm:$0xff]
        %v426 = vld [vmem:[#allocation2 + $0x30] sm:$0xff]
        %v427 = vld [vmem:[#allocation2 + $0x38] sm:$0xff]
        %v428 = vld [vmem:[%s305] sm:$0xf]
        %v429 = vld [vmem:[#allocation2 + $0x40] sm:$0x1]
        %s430 = scalar_lea.vmem %s305, 4
        %v431 = vld [vmem:[%s430] sm:$0xf]
        %vm432 = vsmask.f32 7424
        %v434 = vshrl.u32 %v420, 16
        %v436 = vshll.u32 %v420, 16
        %v438 = vrot.slane %v436, 1
        %v439 = vor.u32 %v434, %v438
        %v441 = vshll.u32 %v421, 16
        %v443 = vrot.slane %v441, 1
        %v444 = vsel %vm432, %v439, %v443
        %v445 = vshrl.u32 %v421, 16
        %v447 = vor.u32 %v445, %v443
        %v449 = vshll.u32 %v422, 16
        %v451 = vrot.slane %v449, 1
        %v452 = vsel %vm432, %v447, %v451
        %v453 = vshrl.u32 %v422, 16
        %v455 = vor.u32 %v453, %v451
        %v457 = vshll.u32 %v423, 16
        %v459 = vrot.slane %v457, 1
        %v460 = vsel %vm432, %v455, %v459
        %v461 = vshrl.u32 %v423, 16
        %v463 = vor.u32 %v461, %v459
        %v465 = vshll.u32 %v424, 16
        %v467 = vrot.slane %v465, 1
        %v468 = vsel %vm432, %v463, %v467
        %v469 = vshrl.u32 %v424, 16
        %v471 = vor.u32 %v469, %v467
        %v473 = vshll.u32 %v425, 16
        %v475 = vrot.slane %v473, 1
        %v476 = vsel %vm432, %v471, %v475
        %v477 = vshrl.u32 %v425, 16
        %v479 = vor.u32 %v477, %v475
        %v481 = vshll.u32 %v426, 16
        %v483 = vrot.slane %v481, 1
        %v484 = vsel %vm432, %v479, %v483
        %v485 = vshrl.u32 %v426, 16
        %v487 = vor.u32 %v485, %v483
        %v489 = vshll.u32 %v427, 16
        %v491 = vrot.slane %v489, 1
        %v492 = vsel %vm432, %v487, %v491
        %v493 = vshrl.u32 %v427, 16
        %v495 = vor.u32 %v493, %v491
        %v497 = vshll.u32 %v429, 16
        %v499 = vrot.slane %v497, 1
        %v500 = vsel %vm432, %v495, %v499
        %v502 = vsel %vm375, %v444, 0
        %v505 = vsel %vm375, %v452, 0
        %v508 = vsel %vm375, %v460, 0
        %v511 = vsel %vm375, %v468, 0
        %v514 = vsel %vm375, %v476, 0
        %v517 = vsel %vm375, %v484, 0
        %v520 = vsel %vm375, %v492, 0
        %v523 = vsel %vm375, %v500, 0
        %vm525 = vcmask 1043456
        %v527 = vsel %vm525, %v431, 0
        %529 = vmatprep.subr.bf16.mxu0 0
        %530 = vmatpush1.bf16.msra.mxu0 %v527
        %531 = vmatprep.subr.bf16.mxu0 0
        %532 = vmatpush1.bf16.msra.mxu0 0
        %533 = vmatprep.subr.bf16.mxu0 0
        %534 = vmatpush1.bf16.msra.mxu0 0
        %535 = vmatprep.subr.bf16.mxu0 0
        %536 = vmatpush1.bf16.msra.mxu0 0
        %537 = vmatprep.subr.bf16.mxu0 0
        %538 = vmatpush1.bf16.msra.mxu0 0
        %539 = vmatprep.subr.bf16.mxu0 0
        %540 = vmatpush1.bf16.msra.mxu0 0
        %541 = vmatprep.subr.bf16.mxu0 0
        %542 = vmatpush1.bf16.msra.mxu0 0
        %543 = vmatprep.subr.bf16.mxu0 0
        %544 = vmatpush1.bf16.msra.mxu0 0
        %545 = vmatprep.subr.bf16.mxu0 0
        %546 = vmatpush1.bf16.msra.mxu0 0
        %547 = vmatprep.subr.bf16.mxu0 0
        %548 = vmatpush1.bf16.msra.mxu0 0
        %549 = vmatprep.subr.bf16.mxu0 0
        %550 = vmatpush1.bf16.msra.mxu0 0
        %551 = vmatprep.subr.bf16.mxu0 0
        %552 = vmatpush1.bf16.msra.mxu0 0
        %553 = vmatprep.subr.bf16.mxu0 0
        %554 = vmatpush1.bf16.msra.mxu0 0
        %555 = vmatprep.subr.bf16.mxu0 0
        %556 = vmatpush1.bf16.msra.mxu0 0
        %557 = vmatprep.subr.bf16.mxu0 0
        %558 = vmatpush1.bf16.msra.mxu0 0
        %559 = vmatprep.subr.bf16.mxu0 0
        %560 = vmatpush1.bf16.msra.mxu0 0
        %561 = vmatprep.mubr.bf16.mxu0 0
        %562 = vmatmul.mubr.bf16.gmra.mrb[0].mxu0 %v502
        %v563 = vpop.f32.mrb[0].mxu0
        %v564 = vadd.f32 0.0, %v563
        %v565 = vpop.f32.mrb[0].mxu0
        %v566 = vpop.f32.mrb[0].mxu0
        %v567 = vpop.f32.mrb[0].mxu0
        %568 = vmatprep.mubr.bf16.mxu0 0
        %569 = vmatmul.mubr.bf16.gmra.mrb[0].mxu0 %v505
        %v570 = vpop.f32.mrb[0].mxu0
        %v571 = vadd.f32 0.0, %v570
        %v572 = vpop.f32.mrb[0].mxu0
        %v573 = vpop.f32.mrb[0].mxu0
        %v574 = vpop.f32.mrb[0].mxu0
        %575 = vmatprep.mubr.bf16.mxu0 0
        %576 = vmatmul.mubr.bf16.gmra.mrb[0].mxu0 %v508
        %v577 = vpop.f32.mrb[0].mxu0
        %v578 = vadd.f32 0.0, %v577
        %v579 = vpop.f32.mrb[0].mxu0
        %v580 = vpop.f32.mrb[0].mxu0
        %v581 = vpop.f32.mrb[0].mxu0
        %582 = vmatprep.mubr.bf16.mxu0 0
        %583 = vmatmul.mubr.bf16.gmra.mrb[0].mxu0 %v511
        %v584 = vpop.f32.mrb[0].mxu0
        %v585 = vadd.f32 0.0, %v584
        %v586 = vpop.f32.mrb[0].mxu0
        %v587 = vpop.f32.mrb[0].mxu0
        %v588 = vpop.f32.mrb[0].mxu0
        %589 = vmatprep.mubr.bf16.mxu0 0
        %590 = vmatmul.mubr.bf16.gmra.mrb[0].mxu0 %v514
        %v591 = vpop.f32.mrb[0].mxu0
        %v592 = vadd.f32 0.0, %v591
        %v593 = vpop.f32.mrb[0].mxu0
        %v594 = vpop.f32.mrb[0].mxu0
        %v595 = vpop.f32.mrb[0].mxu0
        %596 = vmatprep.mubr.bf16.mxu0 0
        %597 = vmatmul.mubr.bf16.gmra.mrb[0].mxu0 %v517
        %v598 = vpop.f32.mrb[0].mxu0
        %v599 = vadd.f32 0.0, %v598
        %v600 = vpop.f32.mrb[0].mxu0
        %v601 = vpop.f32.mrb[0].mxu0
        %v602 = vpop.f32.mrb[0].mxu0
        %603 = vmatprep.mubr.bf16.mxu0 0
        %604 = vmatmul.mubr.bf16.gmra.mrb[0].mxu0 %v520
        %v605 = vpop.f32.mrb[0].mxu0
        %v606 = vadd.f32 0.0, %v605
        %v607 = vpop.f32.mrb[0].mxu0
        %v608 = vpop.f32.mrb[0].mxu0
        %v609 = vpop.f32.mrb[0].mxu0
        %610 = vmatprep.mubr.bf16.mxu0 0
        %611 = vmatmul.mubr.bf16.gmra.mrb[0].mxu0 %v523
        %v612 = vpop.f32.mrb[0].mxu0
        %v613 = vadd.f32 0.0, %v612
        %v614 = vpop.f32.mrb[0].mxu0
        %v615 = vpop.f32.mrb[0].mxu0
        %v616 = vpop.f32.mrb[0].mxu0
        %617 = vdwg.mxu0
        %v618 = vsel %vm375, %v420, 0
        %v620 = vsel %vm375, %v421, 0
        %v622 = vsel %vm375, %v422, 0
        %v624 = vsel %vm375, %v423, 0
        %v626 = vsel %vm375, %v424, 0
        %v628 = vsel %vm375, %v425, 0
        %v630 = vsel %vm375, %v426, 0
        %v632 = vsel %vm375, %v427, 0
        %v635 = vsel %vm525, %v428, 0
        %637 = vmatprep.subr.bf16.mxu0 0
        %638 = vmatpush1.bf16.msra.mxu0 %v635
        %639 = vmatprep.subr.bf16.mxu0 0
        %640 = vmatpush1.bf16.msra.mxu0 0
        %641 = vmatprep.subr.bf16.mxu0 0
        %642 = vmatpush1.bf16.msra.mxu0 0
        %643 = vmatprep.subr.bf16.mxu0 0
        %644 = vmatpush1.bf16.msra.mxu0 0
        %645 = vmatprep.subr.bf16.mxu0 0
        %646 = vmatpush1.bf16.msra.mxu0 0
        %647 = vmatprep.subr.bf16.mxu0 0
        %648 = vmatpush1.bf16.msra.mxu0 0
        %649 = vmatprep.subr.bf16.mxu0 0
        %650 = vmatpush1.bf16.msra.mxu0 0
        %651 = vmatprep.subr.bf16.mxu0 0
        %652 = vmatpush1.bf16.msra.mxu0 0
        %653 = vmatprep.subr.bf16.mxu0 0
        %654 = vmatpush1.bf16.msra.mxu0 0
        %655 = vmatprep.subr.bf16.mxu0 0
        %656 = vmatpush1.bf16.msra.mxu0 0
        %657 = vmatprep.subr.bf16.mxu0 0
        %658 = vmatpush1.bf16.msra.mxu0 0
        %659 = vmatprep.subr.bf16.mxu0 0
        %660 = vmatpush1.bf16.msra.mxu0 0
        %661 = vmatprep.subr.bf16.mxu0 0
        %662 = vmatpush1.bf16.msra.mxu0 0
        %663 = vmatprep.subr.bf16.mxu0 0
        %664 = vmatpush1.bf16.msra.mxu0 0
        %665 = vmatprep.subr.bf16.mxu0 0
        %666 = vmatpush1.bf16.msra.mxu0 0
        %667 = vmatprep.subr.bf16.mxu0 0
        %668 = vmatpush1.bf16.msra.mxu0 0
        %669 = vmatprep.mubr.bf16.mxu0 0
        %670 = vmatmul.mubr.bf16.gmra.mrb[0].mxu0 %v618
        %v671 = vpop.f32.mrb[0].mxu0
        %v672 = vadd.f32 %v564, %v671
        %v673 = vpop.f32.mrb[0].mxu0
        %v674 = vpop.f32.mrb[0].mxu0
        %v675 = vpop.f32.mrb[0].mxu0
        %676 = vmatprep.mubr.bf16.mxu0 0
        %677 = vmatmul.mubr.bf16.gmra.mrb[0].mxu0 %v620
        %v678 = vpop.f32.mrb[0].mxu0
        %v679 = vadd.f32 %v571, %v678
        %v680 = vpop.f32.mrb[0].mxu0
        %v681 = vpop.f32.mrb[0].mxu0
        %v682 = vpop.f32.mrb[0].mxu0
        %683 = vmatprep.mubr.bf16.mxu0 0
        %684 = vmatmul.mubr.bf16.gmra.mrb[0].mxu0 %v622
        %v685 = vpop.f32.mrb[0].mxu0
        %v686 = vadd.f32 %v578, %v685
        %v687 = vpop.f32.mrb[0].mxu0
        %v688 = vpop.f32.mrb[0].mxu0
        %v689 = vpop.f32.mrb[0].mxu0
        %690 = vmatprep.mubr.bf16.mxu0 0
        %691 = vmatmul.mubr.bf16.gmra.mrb[0].mxu0 %v624
        %v692 = vpop.f32.mrb[0].mxu0
        %v693 = vadd.f32 %v585, %v692
        %v694 = vpop.f32.mrb[0].mxu0
        %v695 = vpop.f32.mrb[0].mxu0
        %v696 = vpop.f32.mrb[0].mxu0
        %697 = vmatprep.mubr.bf16.mxu0 0
        %698 = vmatmul.mubr.bf16.gmra.mrb[0].mxu0 %v626
        %v699 = vpop.f32.mrb[0].mxu0
        %v700 = vadd.f32 %v592, %v699
        %v701 = vpop.f32.mrb[0].mxu0
        %v702 = vpop.f32.mrb[0].mxu0
        %v703 = vpop.f32.mrb[0].mxu0
        %704 = vmatprep.mubr.bf16.mxu0 0
        %705 = vmatmul.mubr.bf16.gmra.mrb[0].mxu0 %v628
        %v706 = vpop.f32.mrb[0].mxu0
        %v707 = vadd.f32 %v599, %v706
        %v708 = vpop.f32.mrb[0].mxu0
        %v709 = vpop.f32.mrb[0].mxu0
        %v710 = vpop.f32.mrb[0].mxu0
        %711 = vmatprep.mubr.bf16.mxu0 0
        %712 = vmatmul.mubr.bf16.gmra.mrb[0].mxu0 %v630
        %v713 = vpop.f32.mrb[0].mxu0
        %v714 = vadd.f32 %v606, %v713
        %v715 = vpop.f32.mrb[0].mxu0
        %v716 = vpop.f32.mrb[0].mxu0
        %v717 = vpop.f32.mrb[0].mxu0
        %718 = vmatprep.mubr.bf16.mxu0 0
        %719 = vmatmul.mubr.bf16.gmra.mrb[0].mxu0 %v632
        %v720 = vpop.f32.mrb[0].mxu0
        %v721 = vadd.f32 %v613, %v720
        %v722 = vpop.f32.mrb[0].mxu0
        %v723 = vpop.f32.mrb[0].mxu0
        %v724 = vpop.f32.mrb[0].mxu0
        %725 = vdwg.mxu0
        %v726 = vld [vmem:[#allocation2] sm:$0xfe]
        %s727 = scalar_lea.vmem %s305, 8
        %v728 = vld [vmem:[%s727] sm:$0xf]
        %vm738 = vcmask 1046528
        %v739 = vrot.slane %v726, 1
        %v740 = vrot.slane %v421, 1
        %v741 = vsel %vm738, %v739, %v740
        %v742 = vrot.slane %v422, 1
        %v743 = vsel %vm738, %v740, %v742
        %v744 = vrot.slane %v423, 1
        %v745 = vsel %vm738, %v742, %v744
        %v746 = vrot.slane %v424, 1
        %v747 = vsel %vm738, %v744, %v746
        %v748 = vrot.slane %v425, 1
        %v749 = vsel %vm738, %v746, %v748
        %v750 = vrot.slane %v426, 1
        %v751 = vsel %vm738, %v748, %v750
        %v752 = vrot.slane %v427, 1
        %v753 = vsel %vm738, %v750, %v752
        %v754 = vrot.slane %v429, 1
        %v755 = vsel %vm738, %v752, %v754
        %v757 = vsel %vm375, %v741, 0
        %v760 = vsel %vm375, %v743, 0
        %v763 = vsel %vm375, %v745, 0
        %v766 = vsel %vm375, %v747, 0
        %v769 = vsel %vm375, %v749, 0
        %v772 = vsel %vm375, %v751, 0
        %v775 = vsel %vm375, %v753, 0
        %v778 = vsel %vm375, %v755, 0
        %v781 = vsel %vm525, %v728, 0
        %783 = vmatprep.subr.bf16.mxu0 0
        %784 = vmatpush1.bf16.msra.mxu0 %v781
        %785 = vmatprep.subr.bf16.mxu0 0
        %786 = vmatpush1.bf16.msra.mxu0 0
        %787 = vmatprep.subr.bf16.mxu0 0
        %788 = vmatpush1.bf16.msra.mxu0 0
        %789 = vmatprep.subr.bf16.mxu0 0
        %790 = vmatpush1.bf16.msra.mxu0 0
        %791 = vmatprep.subr.bf16.mxu0 0
        %792 = vmatpush1.bf16.msra.mxu0 0
        %793 = vmatprep.subr.bf16.mxu0 0
        %794 = vmatpush1.bf16.msra.mxu0 0
        %795 = vmatprep.subr.bf16.mxu0 0
        %796 = vmatpush1.bf16.msra.mxu0 0
        %797 = vmatprep.subr.bf16.mxu0 0
        %798 = vmatpush1.bf16.msra.mxu0 0
        %799 = vmatprep.subr.bf16.mxu0 0
        %800 = vmatpush1.bf16.msra.mxu0 0
        %801 = vmatprep.subr.bf16.mxu0 0
        %802 = vmatpush1.bf16.msra.mxu0 0
        %803 = vmatprep.subr.bf16.mxu0 0
        %804 = vmatpush1.bf16.msra.mxu0 0
        %805 = vmatprep.subr.bf16.mxu0 0
        %806 = vmatpush1.bf16.msra.mxu0 0
        %807 = vmatprep.subr.bf16.mxu0 0
        %808 = vmatpush1.bf16.msra.mxu0 0
        %809 = vmatprep.subr.bf16.mxu0 0
        %810 = vmatpush1.bf16.msra.mxu0 0
        %811 = vmatprep.subr.bf16.mxu0 0
        %812 = vmatpush1.bf16.msra.mxu0 0
        %813 = vmatprep.subr.bf16.mxu0 0
        %814 = vmatpush1.bf16.msra.mxu0 0
        %815 = vmatprep.mubr.bf16.mxu0 0
        %816 = vmatmul.mubr.bf16.gmra.mrb[0].mxu0 %v757
        %v817 = vpop.f32.mrb[0].mxu0
        %v818 = vadd.f32 0.0, %v817
        %v819 = vpop.f32.mrb[0].mxu0
        %v820 = vpop.f32.mrb[0].mxu0
        %v821 = vpop.f32.mrb[0].mxu0
        %822 = vmatprep.mubr.bf16.mxu0 0
        %823 = vmatmul.mubr.bf16.gmra.mrb[0].mxu0 %v760
        %v824 = vpop.f32.mrb[0].mxu0
        %v825 = vadd.f32 0.0, %v824
        %v826 = vpop.f32.mrb[0].mxu0
        %v827 = vpop.f32.mrb[0].mxu0
        %v828 = vpop.f32.mrb[0].mxu0
        %829 = vmatprep.mubr.bf16.mxu0 0
        %830 = vmatmul.mubr.bf16.gmra.mrb[0].mxu0 %v763
        %v831 = vpop.f32.mrb[0].mxu0
        %v832 = vadd.f32 0.0, %v831
        %v833 = vpop.f32.mrb[0].mxu0
        %v834 = vpop.f32.mrb[0].mxu0
        %v835 = vpop.f32.mrb[0].mxu0
        %836 = vmatprep.mubr.bf16.mxu0 0
        %837 = vmatmul.mubr.bf16.gmra.mrb[0].mxu0 %v766
        %v838 = vpop.f32.mrb[0].mxu0
        %v839 = vadd.f32 0.0, %v838
        %v840 = vpop.f32.mrb[0].mxu0
        %v841 = vpop.f32.mrb[0].mxu0
        %v842 = vpop.f32.mrb[0].mxu0
        %843 = vmatprep.mubr.bf16.mxu0 0
        %844 = vmatmul.mubr.bf16.gmra.mrb[0].mxu0 %v769
        %v845 = vpop.f32.mrb[0].mxu0
        %v846 = vadd.f32 0.0, %v845
        %v847 = vpop.f32.mrb[0].mxu0
        %v848 = vpop.f32.mrb[0].mxu0
        %v849 = vpop.f32.mrb[0].mxu0
        %850 = vmatprep.mubr.bf16.mxu0 0
        %851 = vmatmul.mubr.bf16.gmra.mrb[0].mxu0 %v772
        %v852 = vpop.f32.mrb[0].mxu0
        %v853 = vadd.f32 0.0, %v852
        %v854 = vpop.f32.mrb[0].mxu0
        %v855 = vpop.f32.mrb[0].mxu0
        %v856 = vpop.f32.mrb[0].mxu0
        %857 = vmatprep.mubr.bf16.mxu0 0
        %858 = vmatmul.mubr.bf16.gmra.mrb[0].mxu0 %v775
        %v859 = vpop.f32.mrb[0].mxu0
        %v860 = vadd.f32 0.0, %v859
        %v861 = vpop.f32.mrb[0].mxu0
        %v862 = vpop.f32.mrb[0].mxu0
        %v863 = vpop.f32.mrb[0].mxu0
        %864 = vmatprep.mubr.bf16.mxu0 0
        %865 = vmatmul.mubr.bf16.gmra.mrb[0].mxu0 %v778
        %v866 = vpop.f32.mrb[0].mxu0
        %v867 = vadd.f32 0.0, %v866
        %v868 = vpop.f32.mrb[0].mxu0
        %v869 = vpop.f32.mrb[0].mxu0
        %v870 = vpop.f32.mrb[0].mxu0
        %871 = vdwg.mxu0
        %v872 = vadd.f32 %v672, %v818
        %v873 = vadd.f32 %v679, %v825
        %v874 = vadd.f32 %v686, %v832
        %v875 = vadd.f32 %v693, %v839
        %v876 = vadd.f32 %v700, %v846
        %v877 = vadd.f32 %v707, %v853
        %v878 = vadd.f32 %v714, %v860
        %v879 = vadd.f32 %v721, %v867
        %v880 = vld [vmem:[#allocation2 + $0x40] sm:$0xff]
        %s881 = scalar_lea.vmem %s305, 12
        %v882 = vld [vmem:[%s881] sm:$0xf]
        %v884 = vsel %vm375, %v880, 0
        %v887 = vsel %vm525, %v882, 0
        %889 = vmatprep.subr.bf16.mxu0 0
        %890 = vmatpush1.bf16.msra.mxu0 %v887
        %891 = vmatprep.subr.bf16.mxu0 0
        %892 = vmatpush1.bf16.msra.mxu0 0
        %893 = vmatprep.subr.bf16.mxu0 0
        %894 = vmatpush1.bf16.msra.mxu0 0
        %895 = vmatprep.subr.bf16.mxu0 0
        %896 = vmatpush1.bf16.msra.mxu0 0
        %897 = vmatprep.subr.bf16.mxu0 0
        %898 = vmatpush1.bf16.msra.mxu0 0
        %899 = vmatprep.subr.bf16.mxu0 0
        %900 = vmatpush1.bf16.msra.mxu0 0
        %901 = vmatprep.subr.bf16.mxu0 0
        %902 = vmatpush1.bf16.msra.mxu0 0
        %903 = vmatprep.subr.bf16.mxu0 0
        %904 = vmatpush1.bf16.msra.mxu0 0
        %905 = vmatprep.subr.bf16.mxu0 0
        %906 = vmatpush1.bf16.msra.mxu0 0
        %907 = vmatprep.subr.bf16.mxu0 0
        %908 = vmatpush1.bf16.msra.mxu0 0
        %909 = vmatprep.subr.bf16.mxu0 0
        %910 = vmatpush1.bf16.msra.mxu0 0
        %911 = vmatprep.subr.bf16.mxu0 0
        %912 = vmatpush1.bf16.msra.mxu0 0
        %913 = vmatprep.subr.bf16.mxu0 0
        %914 = vmatpush1.bf16.msra.mxu0 0
        %915 = vmatprep.subr.bf16.mxu0 0
        %916 = vmatpush1.bf16.msra.mxu0 0
        %917 = vmatprep.subr.bf16.mxu0 0
        %918 = vmatpush1.bf16.msra.mxu0 0
        %919 = vmatprep.subr.bf16.mxu0 0
        %920 = vmatpush1.bf16.msra.mxu0 0
        %921 = vmatprep.mubr.bf16.mxu0 0
        %922 = vmatmul.mubr.bf16.gmra.mrb[0].mxu0 %v620
        %v923 = vpop.f32.mrb[0].mxu0
        %v924 = vadd.f32 0.0, %v923
        %v925 = vpop.f32.mrb[0].mxu0
        %v926 = vpop.f32.mrb[0].mxu0
        %v927 = vpop.f32.mrb[0].mxu0
        %928 = vmatprep.mubr.bf16.mxu0 0
        %929 = vmatmul.mubr.bf16.gmra.mrb[0].mxu0 %v622
        %v930 = vpop.f32.mrb[0].mxu0
        %v931 = vadd.f32 0.0, %v930
        %v932 = vpop.f32.mrb[0].mxu0
        %v933 = vpop.f32.mrb[0].mxu0
        %v934 = vpop.f32.mrb[0].mxu0
        %935 = vmatprep.mubr.bf16.mxu0 0
        %936 = vmatmul.mubr.bf16.gmra.mrb[0].mxu0 %v624
        %v937 = vpop.f32.mrb[0].mxu0
        %v938 = vadd.f32 0.0, %v937
        %v939 = vpop.f32.mrb[0].mxu0
        %v940 = vpop.f32.mrb[0].mxu0
        %v941 = vpop.f32.mrb[0].mxu0
        %942 = vmatprep.mubr.bf16.mxu0 0
        %943 = vmatmul.mubr.bf16.gmra.mrb[0].mxu0 %v626
        %v944 = vpop.f32.mrb[0].mxu0
        %v945 = vadd.f32 0.0, %v944
        %v946 = vpop.f32.mrb[0].mxu0
        %v947 = vpop.f32.mrb[0].mxu0
        %v948 = vpop.f32.mrb[0].mxu0
        %949 = vmatprep.mubr.bf16.mxu0 0
        %950 = vmatmul.mubr.bf16.gmra.mrb[0].mxu0 %v628
        %v951 = vpop.f32.mrb[0].mxu0
        %v952 = vadd.f32 0.0, %v951
        %v953 = vpop.f32.mrb[0].mxu0
        %v954 = vpop.f32.mrb[0].mxu0
        %v955 = vpop.f32.mrb[0].mxu0
        %956 = vmatprep.mubr.bf16.mxu0 0
        %957 = vmatmul.mubr.bf16.gmra.mrb[0].mxu0 %v630
        %v958 = vpop.f32.mrb[0].mxu0
        %v959 = vadd.f32 0.0, %v958
        %v960 = vpop.f32.mrb[0].mxu0
        %v961 = vpop.f32.mrb[0].mxu0
        %v962 = vpop.f32.mrb[0].mxu0
        %963 = vmatprep.mubr.bf16.mxu0 0
        %964 = vmatmul.mubr.bf16.gmra.mrb[0].mxu0 %v632
        %v965 = vpop.f32.mrb[0].mxu0
        %v966 = vadd.f32 0.0, %v965
        %v967 = vpop.f32.mrb[0].mxu0
        %v968 = vpop.f32.mrb[0].mxu0
        %v969 = vpop.f32.mrb[0].mxu0
        %970 = vmatprep.mubr.bf16.mxu0 0
        %971 = vmatmul.mubr.bf16.gmra.mrb[0].mxu0 %v884
        %v972 = vpop.f32.mrb[0].mxu0
        %v973 = vadd.f32 0.0, %v972
        %v974 = vpop.f32.mrb[0].mxu0
        %v975 = vpop.f32.mrb[0].mxu0
        %v976 = vpop.f32.mrb[0].mxu0
        %977 = vdwg.mxu0
        %v978 = vadd.f32 %v872, %v924
        %v979 = vadd.f32 %v873, %v931
        %v980 = vadd.f32 %v874, %v938
        %v981 = vadd.f32 %v875, %v945
        %v982 = vadd.f32 %v876, %v952
        %v983 = vadd.f32 %v877, %v959
        %v984 = vadd.f32 %v878, %v966
        %v985 = vadd.f32 %v879, %v973
        %v986 = vld [vmem:[#allocation2 + $0x8] sm:$0xff]
        %v987 = vld [vmem:[#allocation2 + $0x10] sm:$0xff]
        %v988 = vld [vmem:[#allocation2 + $0x18] sm:$0xff]
        %v989 = vld [vmem:[#allocation2 + $0x20] sm:$0xff]
        %v990 = vld [vmem:[#allocation2 + $0x28] sm:$0xff]
        %v991 = vld [vmem:[#allocation2 + $0x30] sm:$0xff]
        %v992 = vld [vmem:[#allocation2 + $0x38] sm:$0xff]
        %v993 = vld [vmem:[#allocation2 + $0x40] sm:$0xff]
        %v994 = vld [vmem:[#allocation2 + $0x48] sm:$0x1]
        %s995 = scalar_lea.vmem %s305, 16
        %v996 = vld [vmem:[%s995] sm:$0xf]
        %v998 = vshrl.u32 %v986, 16
        %v1000 = vshll.u32 %v986, 16
        %v1002 = vrot.slane %v1000, 1
        %v1003 = vor.u32 %v998, %v1002
        %v1005 = vshll.u32 %v987, 16
        %v1007 = vrot.slane %v1005, 1
        %v1008 = vsel %vm432, %v1003, %v1007
        %v1009 = vshrl.u32 %v987, 16
        %v1011 = vor.u32 %v1009, %v1007
        %v1013 = vshll.u32 %v988, 16
        %v1015 = vrot.slane %v1013, 1
        %v1016 = vsel %vm432, %v1011, %v1015
        %v1017 = vshrl.u32 %v988, 16
        %v1019 = vor.u32 %v1017, %v1015
        %v1021 = vshll.u32 %v989, 16
        %v1023 = vrot.slane %v1021, 1
        %v1024 = vsel %vm432, %v1019, %v1023
        %v1025 = vshrl.u32 %v989, 16
        %v1027 = vor.u32 %v1025, %v1023
        %v1029 = vshll.u32 %v990, 16
        %v1031 = vrot.slane %v1029, 1
        %v1032 = vsel %vm432, %v1027, %v1031
        %v1033 = vshrl.u32 %v990, 16
        %v1035 = vor.u32 %v1033, %v1031
        %v1037 = vshll.u32 %v991, 16
        %v1039 = vrot.slane %v1037, 1
        %v1040 = vsel %vm432, %v1035, %v1039
        %v1041 = vshrl.u32 %v991, 16
        %v1043 = vor.u32 %v1041, %v1039
        %v1045 = vshll.u32 %v992, 16
        %v1047 = vrot.slane %v1045, 1
        %v1048 = vsel %vm432, %v1043, %v1047
        %v1049 = vshrl.u32 %v992, 16
        %v1051 = vor.u32 %v1049, %v1047
        %v1053 = vshll.u32 %v993, 16
        %v1055 = vrot.slane %v1053, 1
        %v1056 = vsel %vm432, %v1051, %v1055
        %v1057 = vshrl.u32 %v993, 16
        %v1059 = vor.u32 %v1057, %v1055
        %v1061 = vshll.u32 %v994, 16
        %v1063 = vrot.slane %v1061, 1
        %v1064 = vsel %vm432, %v1059, %v1063
        %v1066 = vsel %vm375, %v1008, 0
        %v1069 = vsel %vm375, %v1016, 0
        %v1072 = vsel %vm375, %v1024, 0
        %v1075 = vsel %vm375, %v1032, 0
        %v1078 = vsel %vm375, %v1040, 0
        %v1081 = vsel %vm375, %v1048, 0
        %v1084 = vsel %vm375, %v1056, 0
        %v1087 = vsel %vm375, %v1064, 0
        %v1090 = vsel %vm525, %v996, 0
        %1092 = vmatprep.subr.bf16.mxu0 0
        %1093 = vmatpush1.bf16.msra.mxu0 %v1090
        %1094 = vmatprep.subr.bf16.mxu0 0
        %1095 = vmatpush1.bf16.msra.mxu0 0
        %1096 = vmatprep.subr.bf16.mxu0 0
        %1097 = vmatpush1.bf16.msra.mxu0 0
        %1098 = vmatprep.subr.bf16.mxu0 0
        %1099 = vmatpush1.bf16.msra.mxu0 0
        %1100 = vmatprep.subr.bf16.mxu0 0
        %1101 = vmatpush1.bf16.msra.mxu0 0
        %1102 = vmatprep.subr.bf16.mxu0 0
        %1103 = vmatpush1.bf16.msra.mxu0 0
        %1104 = vmatprep.subr.bf16.mxu0 0
        %1105 = vmatpush1.bf16.msra.mxu0 0
        %1106 = vmatprep.subr.bf16.mxu0 0
        %1107 = vmatpush1.bf16.msra.mxu0 0
        %1108 = vmatprep.subr.bf16.mxu0 0
        %1109 = vmatpush1.bf16.msra.mxu0 0
        %1110 = vmatprep.subr.bf16.mxu0 0
        %1111 = vmatpush1.bf16.msra.mxu0 0
        %1112 = vmatprep.subr.bf16.mxu0 0
        %1113 = vmatpush1.bf16.msra.mxu0 0
        %1114 = vmatprep.subr.bf16.mxu0 0
        %1115 = vmatpush1.bf16.msra.mxu0 0
        %1116 = vmatprep.subr.bf16.mxu0 0
        %1117 = vmatpush1.bf16.msra.mxu0 0
        %1118 = vmatprep.subr.bf16.mxu0 0
        %1119 = vmatpush1.bf16.msra.mxu0 0
        %1120 = vmatprep.subr.bf16.mxu0 0
        %1121 = vmatpush1.bf16.msra.mxu0 0
        %1122 = vmatprep.subr.bf16.mxu0 0
        %1123 = vmatpush1.bf16.msra.mxu0 0
        %1124 = vmatprep.mubr.bf16.mxu0 0
        %1125 = vmatmul.mubr.bf16.gmra.mrb[0].mxu0 %v1066
        %v1126 = vpop.f32.mrb[0].mxu0
        %v1127 = vadd.f32 0.0, %v1126
        %v1128 = vpop.f32.mrb[0].mxu0
        %v1129 = vpop.f32.mrb[0].mxu0
        %v1130 = vpop.f32.mrb[0].mxu0
        %1131 = vmatprep.mubr.bf16.mxu0 0
        %1132 = vmatmul.mubr.bf16.gmra.mrb[0].mxu0 %v1069
        %v1133 = vpop.f32.mrb[0].mxu0
        %v1134 = vadd.f32 0.0, %v1133
        %v1135 = vpop.f32.mrb[0].mxu0
        %v1136 = vpop.f32.mrb[0].mxu0
        %v1137 = vpop.f32.mrb[0].mxu0
        %1138 = vmatprep.mubr.bf16.mxu0 0
        %1139 = vmatmul.mubr.bf16.gmra.mrb[0].mxu0 %v1072
        %v1140 = vpop.f32.mrb[0].mxu0
        %v1141 = vadd.f32 0.0, %v1140
        %v1142 = vpop.f32.mrb[0].mxu0
        %v1143 = vpop.f32.mrb[0].mxu0
        %v1144 = vpop.f32.mrb[0].mxu0
        %1145 = vmatprep.mubr.bf16.mxu0 0
        %1146 = vmatmul.mubr.bf16.gmra.mrb[0].mxu0 %v1075
        %v1147 = vpop.f32.mrb[0].mxu0
        %v1148 = vadd.f32 0.0, %v1147
        %v1149 = vpop.f32.mrb[0].mxu0
        %v1150 = vpop.f32.mrb[0].mxu0
        %v1151 = vpop.f32.mrb[0].mxu0
        %1152 = vmatprep.mubr.bf16.mxu0 0
        %1153 = vmatmul.mubr.bf16.gmra.mrb[0].mxu0 %v1078
        %v1154 = vpop.f32.mrb[0].mxu0
        %v1155 = vadd.f32 0.0, %v1154
        %v1156 = vpop.f32.mrb[0].mxu0
        %v1157 = vpop.f32.mrb[0].mxu0
        %v1158 = vpop.f32.mrb[0].mxu0
        %1159 = vmatprep.mubr.bf16.mxu0 0
        %1160 = vmatmul.mubr.bf16.gmra.mrb[0].mxu0 %v1081
        %v1161 = vpop.f32.mrb[0].mxu0
        %v1162 = vadd.f32 0.0, %v1161
        %v1163 = vpop.f32.mrb[0].mxu0
        %v1164 = vpop.f32.mrb[0].mxu0
        %v1165 = vpop.f32.mrb[0].mxu0
        %1166 = vmatprep.mubr.bf16.mxu0 0
        %1167 = vmatmul.mubr.bf16.gmra.mrb[0].mxu0 %v1084
        %v1168 = vpop.f32.mrb[0].mxu0
        %v1169 = vadd.f32 0.0, %v1168
        %v1170 = vpop.f32.mrb[0].mxu0
        %v1171 = vpop.f32.mrb[0].mxu0
        %v1172 = vpop.f32.mrb[0].mxu0
        %1173 = vmatprep.mubr.bf16.mxu0 0
        %1174 = vmatmul.mubr.bf16.gmra.mrb[0].mxu0 %v1087
        %v1175 = vpop.f32.mrb[0].mxu0
        %v1176 = vadd.f32 0.0, %v1175
        %v1177 = vpop.f32.mrb[0].mxu0
        %v1178 = vpop.f32.mrb[0].mxu0
        %v1179 = vpop.f32.mrb[0].mxu0
        %1180 = vdwg.mxu0
        %v1181 = vadd.f32 %v978, %v1127
        %v1182 = vadd.f32 %v979, %v1134
        %v1183 = vadd.f32 %v980, %v1141
        %v1184 = vadd.f32 %v981, %v1148
        %v1185 = vadd.f32 %v982, %v1155
        %v1186 = vadd.f32 %v983, %v1162
        %v1187 = vadd.f32 %v984, %v1169
        %v1188 = vadd.f32 %v985, %v1176
        %v1189 = vld [vmem:[#allocation2 + $0x8] sm:$0xfe]
        %s1190 = scalar_lea.vmem %s305, 20
        %v1191 = vld [vmem:[%s1190] sm:$0xf]
        %v1201 = vrot.slane %v1189, 1
        %v1202 = vrot.slane %v987, 1
        %v1203 = vsel %vm738, %v1201, %v1202
        %v1204 = vrot.slane %v988, 1
        %v1205 = vsel %vm738, %v1202, %v1204
        %v1206 = vrot.slane %v989, 1
        %v1207 = vsel %vm738, %v1204, %v1206
        %v1208 = vrot.slane %v990, 1
        %v1209 = vsel %vm738, %v1206, %v1208
        %v1210 = vrot.slane %v991, 1
        %v1211 = vsel %vm738, %v1208, %v1210
        %v1212 = vrot.slane %v992, 1
        %v1213 = vsel %vm738, %v1210, %v1212
        %v1214 = vrot.slane %v993, 1
        %v1215 = vsel %vm738, %v1212, %v1214
        %v1216 = vrot.slane %v994, 1
        %v1217 = vsel %vm738, %v1214, %v1216
        %v1219 = vsel %vm375, %v1203, 0
        %v1222 = vsel %vm375, %v1205, 0
        %v1225 = vsel %vm375, %v1207, 0
        %v1228 = vsel %vm375, %v1209, 0
        %v1231 = vsel %vm375, %v1211, 0
        %v1234 = vsel %vm375, %v1213, 0
        %v1237 = vsel %vm375, %v1215, 0
        %v1240 = vsel %vm375, %v1217, 0
        %v1243 = vsel %vm525, %v1191, 0
        %1245 = vmatprep.subr.bf16.mxu0 0
        %1246 = vmatpush1.bf16.msra.mxu0 %v1243
        %1247 = vmatprep.subr.bf16.mxu0 0
        %1248 = vmatpush1.bf16.msra.mxu0 0
        %1249 = vmatprep.subr.bf16.mxu0 0
        %1250 = vmatpush1.bf16.msra.mxu0 0
        %1251 = vmatprep.subr.bf16.mxu0 0
        %1252 = vmatpush1.bf16.msra.mxu0 0
        %1253 = vmatprep.subr.bf16.mxu0 0
        %1254 = vmatpush1.bf16.msra.mxu0 0
        %1255 = vmatprep.subr.bf16.mxu0 0
        %1256 = vmatpush1.bf16.msra.mxu0 0
        %1257 = vmatprep.subr.bf16.mxu0 0
        %1258 = vmatpush1.bf16.msra.mxu0 0
        %1259 = vmatprep.subr.bf16.mxu0 0
        %1260 = vmatpush1.bf16.msra.mxu0 0
        %1261 = vmatprep.subr.bf16.mxu0 0
        %1262 = vmatpush1.bf16.msra.mxu0 0
        %1263 = vmatprep.subr.bf16.mxu0 0
        %1264 = vmatpush1.bf16.msra.mxu0 0
        %1265 = vmatprep.subr.bf16.mxu0 0
        %1266 = vmatpush1.bf16.msra.mxu0 0
        %1267 = vmatprep.subr.bf16.mxu0 0
        %1268 = vmatpush1.bf16.msra.mxu0 0
        %1269 = vmatprep.subr.bf16.mxu0 0
        %1270 = vmatpush1.bf16.msra.mxu0 0
        %1271 = vmatprep.subr.bf16.mxu0 0
        %1272 = vmatpush1.bf16.msra.mxu0 0
        %1273 = vmatprep.subr.bf16.mxu0 0
        %1274 = vmatpush1.bf16.msra.mxu0 0
        %1275 = vmatprep.subr.bf16.mxu0 0
        %1276 = vmatpush1.bf16.msra.mxu0 0
        %1277 = vmatprep.mubr.bf16.mxu0 0
        %1278 = vmatmul.mubr.bf16.gmra.mrb[0].mxu0 %v1219
        %v1279 = vpop.f32.mrb[0].mxu0
        %v1280 = vadd.f32 0.0, %v1279
        %v1281 = vpop.f32.mrb[0].mxu0
        %v1282 = vpop.f32.mrb[0].mxu0
        %v1283 = vpop.f32.mrb[0].mxu0
        %1284 = vmatprep.mubr.bf16.mxu0 0
        %1285 = vmatmul.mubr.bf16.gmra.mrb[0].mxu0 %v1222
        %v1286 = vpop.f32.mrb[0].mxu0
        %v1287 = vadd.f32 0.0, %v1286
        %v1288 = vpop.f32.mrb[0].mxu0
        %v1289 = vpop.f32.mrb[0].mxu0
        %v1290 = vpop.f32.mrb[0].mxu0
        %1291 = vmatprep.mubr.bf16.mxu0 0
        %1292 = vmatmul.mubr.bf16.gmra.mrb[0].mxu0 %v1225
        %v1293 = vpop.f32.mrb[0].mxu0
        %v1294 = vadd.f32 0.0, %v1293
        %v1295 = vpop.f32.mrb[0].mxu0
        %v1296 = vpop.f32.mrb[0].mxu0
        %v1297 = vpop.f32.mrb[0].mxu0
        %1298 = vmatprep.mubr.bf16.mxu0 0
        %1299 = vmatmul.mubr.bf16.gmra.mrb[0].mxu0 %v1228
        %v1300 = vpop.f32.mrb[0].mxu0
        %v1301 = vadd.f32 0.0, %v1300
        %v1302 = vpop.f32.mrb[0].mxu0
        %v1303 = vpop.f32.mrb[0].mxu0
        %v1304 = vpop.f32.mrb[0].mxu0
        %1305 = vmatprep.mubr.bf16.mxu0 0
        %1306 = vmatmul.mubr.bf16.gmra.mrb[0].mxu0 %v1231
        %v1307 = vpop.f32.mrb[0].mxu0
        %v1308 = vadd.f32 0.0, %v1307
        %v1309 = vpop.f32.mrb[0].mxu0
        %v1310 = vpop.f32.mrb[0].mxu0
        %v1311 = vpop.f32.mrb[0].mxu0
        %1312 = vmatprep.mubr.bf16.mxu0 0
        %1313 = vmatmul.mubr.bf16.gmra.mrb[0].mxu0 %v1234
        %v1314 = vpop.f32.mrb[0].mxu0
        %v1315 = vadd.f32 0.0, %v1314
        %v1316 = vpop.f32.mrb[0].mxu0
        %v1317 = vpop.f32.mrb[0].mxu0
        %v1318 = vpop.f32.mrb[0].mxu0
        %1319 = vmatprep.mubr.bf16.mxu0 0
        %1320 = vmatmul.mubr.bf16.gmra.mrb[0].mxu0 %v1237
        %v1321 = vpop.f32.mrb[0].mxu0
        %v1322 = vadd.f32 0.0, %v1321
        %v1323 = vpop.f32.mrb[0].mxu0
        %v1324 = vpop.f32.mrb[0].mxu0
        %v1325 = vpop.f32.mrb[0].mxu0
        %1326 = vmatprep.mubr.bf16.mxu0 0
        %1327 = vmatmul.mubr.bf16.gmra.mrb[0].mxu0 %v1240
        %v1328 = vpop.f32.mrb[0].mxu0
        %v1329 = vadd.f32 0.0, %v1328
        %v1330 = vpop.f32.mrb[0].mxu0
        %v1331 = vpop.f32.mrb[0].mxu0
        %v1332 = vpop.f32.mrb[0].mxu0
        %1333 = vdwg.mxu0
        %v1334 = vadd.f32 %v1181, %v1280
        %v1335 = vadd.f32 %v1182, %v1287
        %v1336 = vadd.f32 %v1183, %v1294
        %v1337 = vadd.f32 %v1184, %v1301
        %v1338 = vadd.f32 %v1185, %v1308
        %v1339 = vadd.f32 %v1186, %v1315
        %v1340 = vadd.f32 %v1187, %v1322
        %v1341 = vadd.f32 %v1188, %v1329
        %v1342 = vld [vmem:[#allocation2 + $0x48] sm:$0xff]
        %s1343 = scalar_lea.vmem %s305, 24
        %v1344 = vld [vmem:[%s1343] sm:$0xf]
        %v1345 = vsel %vm375, %v987, 0
        %v1347 = vsel %vm375, %v988, 0
        %v1349 = vsel %vm375, %v989, 0
        %v1351 = vsel %vm375, %v990, 0
        %v1353 = vsel %vm375, %v991, 0
        %v1355 = vsel %vm375, %v992, 0
        %v1357 = vsel %vm375, %v993, 0
        %v1360 = vsel %vm375, %v1342, 0
        %v1363 = vsel %vm525, %v1344, 0
        %1365 = vmatprep.subr.bf16.mxu0 0
        %1366 = vmatpush1.bf16.msra.mxu0 %v1363
        %1367 = vmatprep.subr.bf16.mxu0 0
        %1368 = vmatpush1.bf16.msra.mxu0 0
        %1369 = vmatprep.subr.bf16.mxu0 0
        %1370 = vmatpush1.bf16.msra.mxu0 0
        %1371 = vmatprep.subr.bf16.mxu0 0
        %1372 = vmatpush1.bf16.msra.mxu0 0
        %1373 = vmatprep.subr.bf16.mxu0 0
        %1374 = vmatpush1.bf16.msra.mxu0 0
        %1375 = vmatprep.subr.bf16.mxu0 0
        %1376 = vmatpush1.bf16.msra.mxu0 0
        %1377 = vmatprep.subr.bf16.mxu0 0
        %1378 = vmatpush1.bf16.msra.mxu0 0
        %1379 = vmatprep.subr.bf16.mxu0 0
        %1380 = vmatpush1.bf16.msra.mxu0 0
        %1381 = vmatprep.subr.bf16.mxu0 0
        %1382 = vmatpush1.bf16.msra.mxu0 0
        %1383 = vmatprep.subr.bf16.mxu0 0
        %1384 = vmatpush1.bf16.msra.mxu0 0
        %1385 = vmatprep.subr.bf16.mxu0 0
        %1386 = vmatpush1.bf16.msra.mxu0 0
        %1387 = vmatprep.subr.bf16.mxu0 0
        %1388 = vmatpush1.bf16.msra.mxu0 0
        %1389 = vmatprep.subr.bf16.mxu0 0
        %1390 = vmatpush1.bf16.msra.mxu0 0
        %1391 = vmatprep.subr.bf16.mxu0 0
        %1392 = vmatpush1.bf16.msra.mxu0 0
        %1393 = vmatprep.subr.bf16.mxu0 0
        %1394 = vmatpush1.bf16.msra.mxu0 0
        %1395 = vmatprep.subr.bf16.mxu0 0
        %1396 = vmatpush1.bf16.msra.mxu0 0
        %1397 = vmatprep.mubr.bf16.mxu0 0
        %1398 = vmatmul.mubr.bf16.gmra.mrb[0].mxu0 %v1345
        %v1399 = vpop.f32.mrb[0].mxu0
        %v1400 = vadd.f32 0.0, %v1399
        %v1401 = vpop.f32.mrb[0].mxu0
        %v1402 = vpop.f32.mrb[0].mxu0
        %v1403 = vpop.f32.mrb[0].mxu0
        %1404 = vmatprep.mubr.bf16.mxu0 0
        %1405 = vmatmul.mubr.bf16.gmra.mrb[0].mxu0 %v1347
        %v1406 = vpop.f32.mrb[0].mxu0
        %v1407 = vadd.f32 0.0, %v1406
        %v1408 = vpop.f32.mrb[0].mxu0
        %v1409 = vpop.f32.mrb[0].mxu0
        %v1410 = vpop.f32.mrb[0].mxu0
        %1411 = vmatprep.mubr.bf16.mxu0 0
        %1412 = vmatmul.mubr.bf16.gmra.mrb[0].mxu0 %v1349
        %v1413 = vpop.f32.mrb[0].mxu0
        %v1414 = vadd.f32 0.0, %v1413
        %v1415 = vpop.f32.mrb[0].mxu0
        %v1416 = vpop.f32.mrb[0].mxu0
        %v1417 = vpop.f32.mrb[0].mxu0
        %1418 = vmatprep.mubr.bf16.mxu0 0
        %1419 = vmatmul.mubr.bf16.gmra.mrb[0].mxu0 %v1351
        %v1420 = vpop.f32.mrb[0].mxu0
        %v1421 = vadd.f32 0.0, %v1420
        %v1422 = vpop.f32.mrb[0].mxu0
        %v1423 = vpop.f32.mrb[0].mxu0
        %v1424 = vpop.f32.mrb[0].mxu0
        %1425 = vmatprep.mubr.bf16.mxu0 0
        %1426 = vmatmul.mubr.bf16.gmra.mrb[0].mxu0 %v1353
        %v1427 = vpop.f32.mrb[0].mxu0
        %v1428 = vadd.f32 0.0, %v1427
        %v1429 = vpop.f32.mrb[0].mxu0
        %v1430 = vpop.f32.mrb[0].mxu0
        %v1431 = vpop.f32.mrb[0].mxu0
        %1432 = vmatprep.mubr.bf16.mxu0 0
        %1433 = vmatmul.mubr.bf16.gmra.mrb[0].mxu0 %v1355
        %v1434 = vpop.f32.mrb[0].mxu0
        %v1435 = vadd.f32 0.0, %v1434
        %v1436 = vpop.f32.mrb[0].mxu0
        %v1437 = vpop.f32.mrb[0].mxu0
        %v1438 = vpop.f32.mrb[0].mxu0
        %1439 = vmatprep.mubr.bf16.mxu0 0
        %1440 = vmatmul.mubr.bf16.gmra.mrb[0].mxu0 %v1357
        %v1441 = vpop.f32.mrb[0].mxu0
        %v1442 = vadd.f32 0.0, %v1441
        %v1443 = vpop.f32.mrb[0].mxu0
        %v1444 = vpop.f32.mrb[0].mxu0
        %v1445 = vpop.f32.mrb[0].mxu0
        %1446 = vmatprep.mubr.bf16.mxu0 0
        %1447 = vmatmul.mubr.bf16.gmra.mrb[0].mxu0 %v1360
        %v1448 = vpop.f32.mrb[0].mxu0
        %v1449 = vadd.f32 0.0, %v1448
        %v1450 = vpop.f32.mrb[0].mxu0
        %v1451 = vpop.f32.mrb[0].mxu0
        %v1452 = vpop.f32.mrb[0].mxu0
        %1453 = vdwg.mxu0
        %v1454 = vadd.f32 %v1334, %v1400
        %v1455 = vadd.f32 %v1335, %v1407
        %v1456 = vadd.f32 %v1336, %v1414
        %v1457 = vadd.f32 %v1337, %v1421
        %v1458 = vadd.f32 %v1338, %v1428
        %v1459 = vadd.f32 %v1339, %v1435
        %v1460 = vadd.f32 %v1340, %v1442
        %v1461 = vadd.f32 %v1341, %v1449
        %v1462 = vld [vmem:[#allocation2 + $0x10] sm:$0xff]
        %v1463 = vld [vmem:[#allocation2 + $0x18] sm:$0xff]
        %v1464 = vld [vmem:[#allocation2 + $0x20] sm:$0xff]
        %v1465 = vld [vmem:[#allocation2 + $0x28] sm:$0xff]
        %v1466 = vld [vmem:[#allocation2 + $0x30] sm:$0xff]
        %v1467 = vld [vmem:[#allocation2 + $0x38] sm:$0xff]
        %v1468 = vld [vmem:[#allocation2 + $0x40] sm:$0xff]
        %v1469 = vld [vmem:[#allocation2 + $0x48] sm:$0xff]
        %v1470 = vld [vmem:[#allocation2 + $0x50] sm:$0x1]
        %s1471 = scalar_lea.vmem %s305, 28
        %v1472 = vld [vmem:[%s1471] sm:$0xf]
        %v1474 = vshrl.u32 %v1462, 16
        %v1476 = vshll.u32 %v1462, 16
        %v1478 = vrot.slane %v1476, 1
        %v1479 = vor.u32 %v1474, %v1478
        %v1481 = vshll.u32 %v1463, 16
        %v1483 = vrot.slane %v1481, 1
        %v1484 = vsel %vm432, %v1479, %v1483
        %v1485 = vshrl.u32 %v1463, 16
        %v1487 = vor.u32 %v1485, %v1483
        %v1489 = vshll.u32 %v1464, 16
        %v1491 = vrot.slane %v1489, 1
        %v1492 = vsel %vm432, %v1487, %v1491
        %v1493 = vshrl.u32 %v1464, 16
        %v1495 = vor.u32 %v1493, %v1491
        %v1497 = vshll.u32 %v1465, 16
        %v1499 = vrot.slane %v1497, 1
        %v1500 = vsel %vm432, %v1495, %v1499
        %v1501 = vshrl.u32 %v1465, 16
        %v1503 = vor.u32 %v1501, %v1499
        %v1505 = vshll.u32 %v1466, 16
        %v1507 = vrot.slane %v1505, 1
        %v1508 = vsel %vm432, %v1503, %v1507
        %v1509 = vshrl.u32 %v1466, 16
        %v1511 = vor.u32 %v1509, %v1507
        %v1513 = vshll.u32 %v1467, 16
        %v1515 = vrot.slane %v1513, 1
        %v1516 = vsel %vm432, %v1511, %v1515
        %v1517 = vshrl.u32 %v1467, 16
        %v1519 = vor.u32 %v1517, %v1515
        %v1521 = vshll.u32 %v1468, 16
        %v1523 = vrot.slane %v1521, 1
        %v1524 = vsel %vm432, %v1519, %v1523
        %v1525 = vshrl.u32 %v1468, 16
        %v1527 = vor.u32 %v1525, %v1523
        %v1529 = vshll.u32 %v1469, 16
        %v1531 = vrot.slane %v1529, 1
        %v1532 = vsel %vm432, %v1527, %v1531
        %v1533 = vshrl.u32 %v1469, 16
        %v1535 = vor.u32 %v1533, %v1531
        %v1537 = vshll.u32 %v1470, 16
        %v1539 = vrot.slane %v1537, 1
        %v1540 = vsel %vm432, %v1535, %v1539
        %v1542 = vsel %vm375, %v1484, 0
        %v1545 = vsel %vm375, %v1492, 0
        %v1548 = vsel %vm375, %v1500, 0
        %v1551 = vsel %vm375, %v1508, 0
        %v1554 = vsel %vm375, %v1516, 0
        %v1557 = vsel %vm375, %v1524, 0
        %v1560 = vsel %vm375, %v1532, 0
        %v1563 = vsel %vm375, %v1540, 0
        %v1566 = vsel %vm525, %v1472, 0
        %1568 = vmatprep.subr.bf16.mxu0 0
        %1569 = vmatpush1.bf16.msra.mxu0 %v1566
        %1570 = vmatprep.subr.bf16.mxu0 0
        %1571 = vmatpush1.bf16.msra.mxu0 0
        %1572 = vmatprep.subr.bf16.mxu0 0
        %1573 = vmatpush1.bf16.msra.mxu0 0
        %1574 = vmatprep.subr.bf16.mxu0 0
        %1575 = vmatpush1.bf16.msra.mxu0 0
        %1576 = vmatprep.subr.bf16.mxu0 0
        %1577 = vmatpush1.bf16.msra.mxu0 0
        %1578 = vmatprep.subr.bf16.mxu0 0
        %1579 = vmatpush1.bf16.msra.mxu0 0
        %1580 = vmatprep.subr.bf16.mxu0 0
        %1581 = vmatpush1.bf16.msra.mxu0 0
        %1582 = vmatprep.subr.bf16.mxu0 0
        %1583 = vmatpush1.bf16.msra.mxu0 0
        %1584 = vmatprep.subr.bf16.mxu0 0
        %1585 = vmatpush1.bf16.msra.mxu0 0
        %1586 = vmatprep.subr.bf16.mxu0 0
        %1587 = vmatpush1.bf16.msra.mxu0 0
        %1588 = vmatprep.subr.bf16.mxu0 0
        %1589 = vmatpush1.bf16.msra.mxu0 0
        %1590 = vmatprep.subr.bf16.mxu0 0
        %1591 = vmatpush1.bf16.msra.mxu0 0
        %1592 = vmatprep.subr.bf16.mxu0 0
        %1593 = vmatpush1.bf16.msra.mxu0 0
        %1594 = vmatprep.subr.bf16.mxu0 0
        %1595 = vmatpush1.bf16.msra.mxu0 0
        %1596 = vmatprep.subr.bf16.mxu0 0
        %1597 = vmatpush1.bf16.msra.mxu0 0
        %1598 = vmatprep.subr.bf16.mxu0 0
        %1599 = vmatpush1.bf16.msra.mxu0 0
        %1600 = vmatprep.mubr.bf16.mxu0 0
        %1601 = vmatmul.mubr.bf16.gmra.mrb[0].mxu0 %v1542
        %v1602 = vpop.f32.mrb[0].mxu0
        %v1603 = vadd.f32 0.0, %v1602
        %v1604 = vpop.f32.mrb[0].mxu0
        %v1605 = vpop.f32.mrb[0].mxu0
        %v1606 = vpop.f32.mrb[0].mxu0
        %1607 = vmatprep.mubr.bf16.mxu0 0
        %1608 = vmatmul.mubr.bf16.gmra.mrb[0].mxu0 %v1545
        %v1609 = vpop.f32.mrb[0].mxu0
        %v1610 = vadd.f32 0.0, %v1609
        %v1611 = vpop.f32.mrb[0].mxu0
        %v1612 = vpop.f32.mrb[0].mxu0
        %v1613 = vpop.f32.mrb[0].mxu0
        %1614 = vmatprep.mubr.bf16.mxu0 0
        %1615 = vmatmul.mubr.bf16.gmra.mrb[0].mxu0 %v1548
        %v1616 = vpop.f32.mrb[0].mxu0
        %v1617 = vadd.f32 0.0, %v1616
        %v1618 = vpop.f32.mrb[0].mxu0
        %v1619 = vpop.f32.mrb[0].mxu0
        %v1620 = vpop.f32.mrb[0].mxu0
        %1621 = vmatprep.mubr.bf16.mxu0 0
        %1622 = vmatmul.mubr.bf16.gmra.mrb[0].mxu0 %v1551
        %v1623 = vpop.f32.mrb[0].mxu0
        %v1624 = vadd.f32 0.0, %v1623
        %v1625 = vpop.f32.mrb[0].mxu0
        %v1626 = vpop.f32.mrb[0].mxu0
        %v1627 = vpop.f32.mrb[0].mxu0
        %1628 = vmatprep.mubr.bf16.mxu0 0
        %1629 = vmatmul.mubr.bf16.gmra.mrb[0].mxu0 %v1554
        %v1630 = vpop.f32.mrb[0].mxu0
        %v1631 = vadd.f32 0.0, %v1630
        %v1632 = vpop.f32.mrb[0].mxu0
        %v1633 = vpop.f32.mrb[0].mxu0
        %v1634 = vpop.f32.mrb[0].mxu0
        %1635 = vmatprep.mubr.bf16.mxu0 0
        %1636 = vmatmul.mubr.bf16.gmra.mrb[0].mxu0 %v1557
        %v1637 = vpop.f32.mrb[0].mxu0
        %v1638 = vadd.f32 0.0, %v1637
        %v1639 = vpop.f32.mrb[0].mxu0
        %v1640 = vpop.f32.mrb[0].mxu0
        %v1641 = vpop.f32.mrb[0].mxu0
        %1642 = vmatprep.mubr.bf16.mxu0 0
        %1643 = vmatmul.mubr.bf16.gmra.mrb[0].mxu0 %v1560
        %v1644 = vpop.f32.mrb[0].mxu0
        %v1645 = vadd.f32 0.0, %v1644
        %v1646 = vpop.f32.mrb[0].mxu0
        %v1647 = vpop.f32.mrb[0].mxu0
        %v1648 = vpop.f32.mrb[0].mxu0
        %1649 = vmatprep.mubr.bf16.mxu0 0
        %1650 = vmatmul.mubr.bf16.gmra.mrb[0].mxu0 %v1563
        %v1651 = vpop.f32.mrb[0].mxu0
        %v1652 = vadd.f32 0.0, %v1651
        %v1653 = vpop.f32.mrb[0].mxu0
        %v1654 = vpop.f32.mrb[0].mxu0
        %v1655 = vpop.f32.mrb[0].mxu0
        %1656 = vdwg.mxu0
        %v1657 = vadd.f32 %v1454, %v1603
        %v1658 = vadd.f32 %v1455, %v1610
        %v1659 = vadd.f32 %v1456, %v1617
        %v1660 = vadd.f32 %v1457, %v1624
        %v1661 = vadd.f32 %v1458, %v1631
        %v1662 = vadd.f32 %v1459, %v1638
        %v1663 = vadd.f32 %v1460, %v1645
        %v1664 = vadd.f32 %v1461, %v1652
        %v1665 = vld [vmem:[#allocation2 + $0x10] sm:$0xfe]
        %s1666 = scalar_lea.vmem %s305, 32
        %v1667 = vld [vmem:[%s1666] sm:$0xf]
        %v1677 = vrot.slane %v1665, 1
        %v1678 = vrot.slane %v1463, 1
        %v1679 = vsel %vm738, %v1677, %v1678
        %v1680 = vrot.slane %v1464, 1
        %v1681 = vsel %vm738, %v1678, %v1680
        %v1682 = vrot.slane %v1465, 1
        %v1683 = vsel %vm738, %v1680, %v1682
        %v1684 = vrot.slane %v1466, 1
        %v1685 = vsel %vm738, %v1682, %v1684
        %v1686 = vrot.slane %v1467, 1
        %v1687 = vsel %vm738, %v1684, %v1686
        %v1688 = vrot.slane %v1468, 1
        %v1689 = vsel %vm738, %v1686, %v1688
        %v1690 = vrot.slane %v1469, 1
        %v1691 = vsel %vm738, %v1688, %v1690
        %v1692 = vrot.slane %v1470, 1
        %v1693 = vsel %vm738, %v1690, %v1692
        %v1695 = vsel %vm375, %v1679, 0
        %v1698 = vsel %vm375, %v1681, 0
        %v1701 = vsel %vm375, %v1683, 0
        %v1704 = vsel %vm375, %v1685, 0
        %v1707 = vsel %vm375, %v1687, 0
        %v1710 = vsel %vm375, %v1689, 0
        %v1713 = vsel %vm375, %v1691, 0
        %v1716 = vsel %vm375, %v1693, 0
        %v1719 = vsel %vm525, %v1667, 0
        %1721 = vmatprep.subr.bf16.mxu0 0
        %1722 = vmatpush1.bf16.msra.mxu0 %v1719
        %1723 = vmatprep.subr.bf16.mxu0 0
        %1724 = vmatpush1.bf16.msra.mxu0 0
        %1725 = vmatprep.subr.bf16.mxu0 0
        %1726 = vmatpush1.bf16.msra.mxu0 0
        %1727 = vmatprep.subr.bf16.mxu0 0
        %1728 = vmatpush1.bf16.msra.mxu0 0
        %1729 = vmatprep.subr.bf16.mxu0 0
        %1730 = vmatpush1.bf16.msra.mxu0 0
        %1731 = vmatprep.subr.bf16.mxu0 0
        %1732 = vmatpush1.bf16.msra.mxu0 0
        %1733 = vmatprep.subr.bf16.mxu0 0
        %1734 = vmatpush1.bf16.msra.mxu0 0
        %1735 = vmatprep.subr.bf16.mxu0 0
        %1736 = vmatpush1.bf16.msra.mxu0 0
        %1737 = vmatprep.subr.bf16.mxu0 0
        %1738 = vmatpush1.bf16.msra.mxu0 0
        %1739 = vmatprep.subr.bf16.mxu0 0
        %1740 = vmatpush1.bf16.msra.mxu0 0
        %1741 = vmatprep.subr.bf16.mxu0 0
        %1742 = vmatpush1.bf16.msra.mxu0 0
        %1743 = vmatprep.subr.bf16.mxu0 0
        %1744 = vmatpush1.bf16.msra.mxu0 0
        %1745 = vmatprep.subr.bf16.mxu0 0
        %1746 = vmatpush1.bf16.msra.mxu0 0
        %1747 = vmatprep.subr.bf16.mxu0 0
        %1748 = vmatpush1.bf16.msra.mxu0 0
        %1749 = vmatprep.subr.bf16.mxu0 0
        %1750 = vmatpush1.bf16.msra.mxu0 0
        %1751 = vmatprep.subr.bf16.mxu0 0
        %1752 = vmatpush1.bf16.msra.mxu0 0
        %1753 = vmatprep.mubr.bf16.mxu0 0
        %1754 = vmatmul.mubr.bf16.gmra.mrb[0].mxu0 %v1695
        %v1755 = vpop.f32.mrb[0].mxu0
        %v1756 = vadd.f32 0.0, %v1755
        %v1757 = vpop.f32.mrb[0].mxu0
        %v1758 = vpop.f32.mrb[0].mxu0
        %v1759 = vpop.f32.mrb[0].mxu0
        %1760 = vmatprep.mubr.bf16.mxu0 0
        %1761 = vmatmul.mubr.bf16.gmra.mrb[0].mxu0 %v1698
        %v1762 = vpop.f32.mrb[0].mxu0
        %v1763 = vadd.f32 0.0, %v1762
        %v1764 = vpop.f32.mrb[0].mxu0
        %v1765 = vpop.f32.mrb[0].mxu0
        %v1766 = vpop.f32.mrb[0].mxu0
        %1767 = vmatprep.mubr.bf16.mxu0 0
        %1768 = vmatmul.mubr.bf16.gmra.mrb[0].mxu0 %v1701
        %v1769 = vpop.f32.mrb[0].mxu0
        %v1770 = vadd.f32 0.0, %v1769
        %v1771 = vpop.f32.mrb[0].mxu0
        %v1772 = vpop.f32.mrb[0].mxu0
        %v1773 = vpop.f32.mrb[0].mxu0
        %1774 = vmatprep.mubr.bf16.mxu0 0
        %1775 = vmatmul.mubr.bf16.gmra.mrb[0].mxu0 %v1704
        %v1776 = vpop.f32.mrb[0].mxu0
        %v1777 = vadd.f32 0.0, %v1776
        %v1778 = vpop.f32.mrb[0].mxu0
        %v1779 = vpop.f32.mrb[0].mxu0
        %v1780 = vpop.f32.mrb[0].mxu0
        %1781 = vmatprep.mubr.bf16.mxu0 0
        %1782 = vmatmul.mubr.bf16.gmra.mrb[0].mxu0 %v1707
        %v1783 = vpop.f32.mrb[0].mxu0
        %v1784 = vadd.f32 0.0, %v1783
        %v1785 = vpop.f32.mrb[0].mxu0
        %v1786 = vpop.f32.mrb[0].mxu0
        %v1787 = vpop.f32.mrb[0].mxu0
        %1788 = vmatprep.mubr.bf16.mxu0 0
        %1789 = vmatmul.mubr.bf16.gmra.mrb[0].mxu0 %v1710
        %v1790 = vpop.f32.mrb[0].mxu0
        %v1791 = vadd.f32 0.0, %v1790
        %v1792 = vpop.f32.mrb[0].mxu0
        %v1793 = vpop.f32.mrb[0].mxu0
        %v1794 = vpop.f32.mrb[0].mxu0
        %1795 = vmatprep.mubr.bf16.mxu0 0
        %1796 = vmatmul.mubr.bf16.gmra.mrb[0].mxu0 %v1713
        %v1797 = vpop.f32.mrb[0].mxu0
        %v1798 = vadd.f32 0.0, %v1797
        %v1799 = vpop.f32.mrb[0].mxu0
        %v1800 = vpop.f32.mrb[0].mxu0
        %v1801 = vpop.f32.mrb[0].mxu0
        %1802 = vmatprep.mubr.bf16.mxu0 0
        %1803 = vmatmul.mubr.bf16.gmra.mrb[0].mxu0 %v1716
        %v1804 = vpop.f32.mrb[0].mxu0
        %v1805 = vadd.f32 0.0, %v1804
        %v1806 = vpop.f32.mrb[0].mxu0
        %v1807 = vpop.f32.mrb[0].mxu0
        %v1808 = vpop.f32.mrb[0].mxu0
        %1809 = vdwg.mxu0
        %v1810 = vadd.f32 %v1657, %v1756
        %v1811 = vadd.f32 %v1658, %v1763
        %v1812 = vadd.f32 %v1659, %v1770
        %v1813 = vadd.f32 %v1660, %v1777
        %v1814 = vadd.f32 %v1661, %v1784
        %v1815 = vadd.f32 %v1662, %v1791
        %v1816 = vadd.f32 %v1663, %v1798
        %v1817 = vadd.f32 %v1664, %v1805
        %v1818 = vld [vmem:[%s308] sm:$0x1]
        %v1820 = vlaneseq
        %v1821 = vshrl.u32 %v1820, 7
        %v1822 = vsub.s32 0, %v1821
        %v1823 = vrot.slane %v1818, %v1822
        %v1825 = vadd.f32 %v1810, %v1823
        %v1826 = vadd.f32 %v1811, %v1823
        %v1827 = vadd.f32 %v1812, %v1823
        %v1828 = vadd.f32 %v1813, %v1823
        %v1829 = vadd.f32 %v1814, %v1823
        %v1830 = vadd.f32 %v1815, %v1823
        %v1831 = vadd.f32 %v1816, %v1823
        %v1832 = vadd.f32 %v1817, %v1823
        %v1833 = vmax.f32 %v1825, 0.0
        %v1834 = vmax.f32 %v1826, 0.0
        %v1835 = vmax.f32 %v1827, 0.0
        %v1836 = vmax.f32 %v1828, 0.0
        %v1837 = vmax.f32 %v1829, 0.0
        %v1838 = vmax.f32 %v1830, 0.0
        %v1839 = vmax.f32 %v1831, 0.0
        %v1840 = vmax.f32 %v1832, 0.0
        %v1841 = vpack.c.bf16 %v1833, %v1833
        %v1842 = vpack.c.bf16 %v1834, %v1834
        %v1843 = vpack.c.bf16 %v1835, %v1835
        %v1844 = vpack.c.bf16 %v1836, %v1836
        %v1845 = vpack.c.bf16 %v1837, %v1837
        %v1846 = vpack.c.bf16 %v1838, %v1838
        %v1847 = vpack.c.bf16 %v1839, %v1839
        %v1848 = vpack.c.bf16 %v1840, %v1840
        %vm1849 = vcmask 125952
        %1850 = vst.msk [vmem:[%s279] sm:$0xf] %vm1849, %v1841
        %1851 = vst.msk [vmem:[%s279 + $0x4] sm:$0xf] %vm1849, %v1842
        %1852 = vst.msk [vmem:[%s279 + $0x8] sm:$0xf] %vm1849, %v1843
        %1853 = vst.msk [vmem:[%s279 + $0xc] sm:$0xf] %vm1849, %v1844
        %1854 = vst.msk [vmem:[%s279 + $0x10] sm:$0xf] %vm1849, %v1845
        %1855 = vst.msk [vmem:[%s279 + $0x14] sm:$0xf] %vm1849, %v1846
        %1856 = vst.msk [vmem:[%s279 + $0x18] sm:$0xf] %vm1849, %v1847
        %1857 = vst.msk [vmem:[%s279 + $0x1c] sm:$0xf] %vm1849, %v1848
        %s1858 = sand.u32 %s159, 1
        %s1859 = scalar_lea.sflag [#allocation4], %s1858
        %s1860 = sand.u32 %s159, 1
        %s1861 = smul.addr %s1860, 32
        %s1862 = scalar_lea.vmem [#allocation3], %s1861
        // Predicated region
        $region37: #{tpu_custom_call.1} parent=35 // pred_check
          %p1863 = pneg %p169
        $region38: #{tpu_custom_call.1} parent=35 // pred_check_branch
          %1865 = sbr.rel (%p1863) target = $region40
        $region39: #{tpu_custom_call.1} parent=35 // pred_region
          %s1866 = smul.u32 8, %s25
          %s1868 = ssub.s32 512, 512
          %1869 = vsyncadd %s1859, %s1868
          %s1870 = smul.addr %s24, 8
          %s1871 = sadd.s32 %s1866, %s1870
          %s1872 = smul.addr %s23, 8
          %s1873 = sadd.s32 %s1871, %s1872
          %s1874 = smul.addr %s1873, 64
          %s1875 = scalar_lea.hbm %s4, %s1874
          %s1876 = sshll.u32 %s1862, 4
          %s1877 = int_to_ptr.vmem [resolvable:$true] %s1876
          %1882 = dma.vmem_to_hbm [thread:$0]  %s1877, 512, %s1875, %s1859, 64, 64, 4
        $region40: #{tpu_custom_call.1} parent=35 // pred_fallthru
          _
      $region36: #{tpu_custom_call.1} parent=5 // pred_fallthru
        _
      %p1883 = scmp.le.s32.totalorder 2, %s13
      // Predicated region
      $region41: #{tpu_custom_call.1} parent=5 // pred_check
        %p1884 = pneg %p1883
      $region42: #{tpu_custom_call.1} parent=5 // pred_check_branch
        %1886 = sbr.rel (%p1884) target = $region44
      $region43: #{tpu_custom_call.1} parent=5 // pred_region
        %s1887 = ssub.s32 %s13, 2
        // Predicated region
        $region45: #{tpu_custom_call.1} parent=43 // pred_check
          %p1888 = pneg %p175
        $region46: #{tpu_custom_call.1} parent=43 // pred_check_branch
          %1890 = sbr.rel (%p1888) target = $region48
        $region47: #{tpu_custom_call.1} parent=43 // pred_region
          %s1891 = sand.u32 %s160, 1
          %s1892 = scalar_lea.sflag [#allocation4], %s1891
          %s1893 = sand.u32 %s160, 1
          %s1894 = smul.addr %s1893, 32
          %s1895 = scalar_lea.vmem [#allocation3], %s1894
          %1896 = dma.done %s1892, 512
        $region48: #{tpu_custom_call.1} parent=43 // pred_fallthru
          _
      $region44: #{tpu_custom_call.1} parent=5 // pred_fallthru
        _
    $region6: #{tpu_custom_call.1} parent=1 // loop_footer
      %s17 = sadd.s32 1, %s13
    $region7: #{tpu_custom_call.1} parent=1 // loop_footer_branch
      %12 = sbr.rel target = $region3
    $region8: #{tpu_custom_call.1} parent=1 // loop_exit
      _
    %1897 = vsyncpa [#allocation4], 1
    %s1898 = scalar_lea.sflag [#allocation4], 1
    %1899 = vsyncpa %s1898, 1

</llo_original>
